<compile_context>
chip_gen: v6e
topology: v6e:2x2x1
jax: 0.10.0
libtpu: 0.0.40
codegen_flags: <defaults>
</compile_context>

<pallas_src>
import functools

import numpy as np
import jax
import jax.numpy as jnp
from jax.experimental import pallas as pl
from jax.experimental.pallas import tpu as pltpu


def _gru_actor_kernel(eps_ref, x_ref,
                      w_i_ref, w_h_ref, b_i_ref, b_hn_ref,
                      w_lin_ref, b_lin_ref,
                      out_ref,
                      gi_scr,
                      *, batch, seq_len, h_size):
    """One grid step == one independent batch block (whole sequence inside).

    Time-major rows within the block: row = t * batch + b.

    x_ref:     (T*Bb, I)   inputs
    w_i_ref:   (I, 3H)     fused input weights (transposed, gate order r|z|n)
    w_h_ref:   (H, 3H)     fused hidden weights (transposed, gate order r|z|n)
    b_i_ref:   (1, 3H)     fused bias [b_ir+b_hr | b_iz+b_hz | b_in]
    b_hn_ref:  (1, H)      b_hn (must stay inside r * (h@W_hn + b_hn))
    w_lin_ref: (H, A)      output linear weight (transposed), b_lin_ref: (1, A)
    out_ref:   (T*Bb, A)   eps-bounded softmax, time-major rows
    gi_scr:    (T*Bb, 3H)  precomputed input projections
    """
    f32 = jnp.float32
    Bb = batch
    T = seq_len
    H = h_size
    A = out_ref.shape[1]
    mm_dtype = w_i_ref.dtype          # matmul operand dtype (f32 or bf16)

    # ---- Phase 1: fused input projection for ALL timesteps (off the serial
    # path).  One (T*Bb, I) x (I, 3H) MXU matmul; r/z biases folded here.
    gi_scr[...] = (jnp.dot(x_ref[...], w_i_ref[...],
                           preferred_element_type=f32) + b_i_ref[...])

    # Loop-invariant operands loaded once.
    w_h = w_h_ref[...]
    b_hn = b_hn_ref[...]

    # ---- Phase 2: serial recurrence.  One fused (Bb,H)x(H,3H) matmul per
    # step; T is small & static -> fully unrolled Python loop (switch to
    # lax.fori_loop(..., unroll=2..4) + a hist scratch if T grows large).
    h = jnp.zeros((Bb, H), f32)
    hs = []
    for t in range(T):
        gi = gi_scr[pl.ds(t * Bb, Bb), :]                     # contiguous rows
        gh = jnp.dot(h.astype(mm_dtype), w_h, preferred_element_type=f32)
        rz = jax.nn.sigmoid(gi[:, :2 * H] + gh[:, :2 * H])    # one EUP stream
        r = rz[:, :H]
        z = rz[:, H:]
        n = jnp.tanh(gi[:, 2 * H:] + r * (gh[:, 2 * H:] + b_hn))
        h = (1.0 - z) * n + z * h
        hs.append(h)                                          # stays in vregs

    # ---- Phase 3: output head, once, over the whole time-major sequence.
    hs_all = jnp.concatenate(hs, axis=0)                      # (T*Bb, H)
    logits = (jnp.dot(hs_all.astype(mm_dtype), w_lin_ref[...],
                      preferred_element_type=f32) + b_lin_ref[...])
    m = jnp.max(logits, axis=-1, keepdims=True)
    e = jnp.exp(logits - m)
    # Exact normalization (runs once, off the serial path) so output rows sum
    # to 1 within f32 roundoff.
    sm = e / jnp.sum(e, axis=-1, keepdims=True)

    eps = eps_ref[0]
    out_ref[...] = (1.0 - eps) * sm + eps / A


def gru_actor_forward(obs_seq, eps, params, *, matmul_dtype=jnp.float32,
                      b_block=None):
    """obs_seq: (B, T, input_size) float32 (batch-first, like PyTorch).
    Returns (B, T, action_size) float32.

    matmul_dtype=jnp.bfloat16 casts matmul operands only (v6e/v7x MXU win);
    accumulation and all elementwise math stay f32 (v5e-safe).
    b_block=B//2 shards the batch across v7x's two TensorCores.
    """
    B, T, I = obs_seq.shape
    H = params["w_hh"].shape[1]          # w_hh: (3H, H)
    A = params["w_lin"].shape[0]         # w_lin: (A, H)

    if b_block is None:
        b_block = B                      # whole batch in one grid step
    assert B % b_block == 0
    nb = B // b_block                    # >1 blocks -> megacore-parallel (v7x)
    rows = T * b_block

    # Time-major within each batch block (row = t*b_block + b); tiny transpose
    # on a few KiB in the wrapper, so every in-kernel per-step read is a
    # contiguous slab and Phase 3 needs no re-gather.
    x2d = (obs_seq.reshape(nb, b_block, T, I)
           .transpose(0, 2, 1, 3)
           .reshape(nb * rows, I)
           .astype(matmul_dtype))

    w_ih = jnp.asarray(params["w_ih"], jnp.float32)   # (3H, I), gate order r,z,n
    w_hh = jnp.asarray(params["w_hh"], jnp.float32)   # (3H, H)
    b_ih = jnp.asarray(params["b_ih"], jnp.float32)
    b_hh = jnp.asarray(params["b_hh"], jnp.float32)

    # Fused transposed weights (columns already in gate order r|z|n).
    w_i = w_ih.T.astype(matmul_dtype)                 # (I, 3H)
    w_h = w_hh.T.astype(matmul_dtype)                 # (H, 3H)
    # Fold r/z biases (b_i* + b_h*) into the precomputed input projection;
    # b_hn must stay separate: n = tanh(gi_n + r * (h@W_hn^T + b_hn)).
    b_i = jnp.concatenate([b_ih[0:H] + b_hh[0:H],
                           b_ih[H:2 * H] + b_hh[H:2 * H],
                           b_ih[2 * H:3 * H]]).reshape(1, 3 * H)
    b_hn = b_hh[2 * H:3 * H].reshape(1, H)

    w_lin = jnp.asarray(params["w_lin"], jnp.float32).T.astype(matmul_dtype)  # (H, A)
    b_lin = jnp.asarray(params["b_lin"], jnp.float32).reshape(1, A)
    eps_arr = jnp.asarray([eps], dtype=jnp.float32)

    kernel = functools.partial(_gru_actor_kernel,
                               batch=b_block, seq_len=T, h_size=H)
    const = lambda i: (0, 0)   # weights/biases: same block every grid step

    itemsize = jnp.dtype(matmul_dtype).itemsize
    cost = pl.CostEstimate(
        flops=2 * B * T * (I * 3 * H + H * 3 * H + H * A),
        transcendentals=B * T * (3 * H + A),
        bytes_accessed=(B * T * I * itemsize
                        + (I * 3 * H + H * 3 * H + H * A) * itemsize
                        + (4 * H + A) * 4
                        + B * T * A * 4))

    out2d = pl.pallas_call(
        kernel,
        out_shape=jax.ShapeDtypeStruct((nb * rows, A), jnp.float32),
        grid=(nb,),
        in_specs=[
            pl.BlockSpec(memory_space=pltpu.MemorySpace.SMEM),   # eps scalar
            pl.BlockSpec((rows, I), lambda i: (i, 0)),           # x block rows
            pl.BlockSpec((I, 3 * H), const),                     # W_i fused
            pl.BlockSpec((H, 3 * H), const),                     # W_h fused
            pl.BlockSpec((1, 3 * H), const),                     # b_i fused
            pl.BlockSpec((1, H), const),                         # b_hn
            pl.BlockSpec((H, A), const),                         # W_lin^T
            pl.BlockSpec((1, A), const),                         # b_lin
        ],
        out_specs=pl.BlockSpec((rows, A), lambda i: (i, 0)),
        scratch_shapes=[pltpu.VMEM((rows, 3 * H), jnp.float32)],
        compiler_params=pltpu.CompilerParams(
            dimension_semantics=("parallel",)),   # independent batch blocks
        cost_estimate=cost,
    )(eps_arr, x2d, w_i, w_h, b_i, b_hn, w_lin, b_lin)

    # Time-major blocks back to caller-facing (B, T, A); tiny transpose.
    return (out2d.reshape(nb, T, b_block, A)
            .transpose(0, 2, 1, 3)
            .reshape(B, T, A))


def gru_actor_reference(obs_seq, eps, params):
    """Pure-JAX reference (matches torch.nn.GRU + Linear + softmax + eps mix)."""
    B, T, I = obs_seq.shape
    H = params["w_hh"].shape[1]
    A = params["w_lin"].shape[0]
    w_ih, w_hh = params["w_ih"], params["w_hh"]
    b_ih, b_hh = params["b_ih"], params["b_hh"]

    def step(h, x_t):
        gi = x_t @ w_ih.T + b_ih
        gh = h @ w_hh.T + b_hh
        ir, iz, inn = jnp.split(gi, 3, axis=-1)
        hr, hz, hn = jnp.split(gh, 3, axis=-1)
        r = jax.nn.sigmoid(ir + hr)
        z = jax.nn.sigmoid(iz + hz)
        n = jnp.tanh(inn + r * hn)
        h_new = (1.0 - z) * n + z * h
        return h_new, h_new

    h0 = jnp.zeros((B, H), jnp.float32)
    _, hs = jax.lax.scan(step, h0, jnp.transpose(obs_seq, (1, 0, 2)))  # (T,B,H)
    logits = hs @ params["w_lin"].T + params["b_lin"]
    sm = jax.nn.softmax(logits, axis=-1)
    out = (1.0 - eps) * sm + eps / A
    return jnp.transpose(out, (1, 0, 2))


def init_params(key, input_size, h_size, action_size):
    """Deterministic init mimicking PyTorch's U(-1/sqrt(H), 1/sqrt(H))."""
    ks = jax.random.split(key, 7)
    kg = 1.0 / np.sqrt(h_size)
    return {
        "w_ih": jax.random.uniform(ks[0], (3 * h_size, input_size), jnp.float32, -kg, kg),
        "w_hh": jax.random.uniform(ks[1], (3 * h_size, h_size), jnp.float32, -kg, kg),
        "b_ih": jax.random.uniform(ks[2], (3 * h_size,), jnp.float32, -kg, kg),
        "b_hh": jax.random.uniform(ks[3], (3 * h_size,), jnp.float32, -kg, kg),
        "w_lin": jax.random.uniform(ks[4], (action_size, h_size), jnp.float32, -kg, kg),
        "b_lin": jax.random.uniform(ks[5], (action_size,), jnp.float32, -kg, kg),
    }


if __name__ == "__main__":
    B, T, I, H, A = 4, 8, 16, 32, 8
    eps = 0.1

    key = jax.random.PRNGKey(0)
    k_param, k_obs = jax.random.split(key)
    params = init_params(k_param, I, H, A)
    obs_seq = jax.random.normal(k_obs, (B, T, I), jnp.float32)

    ref = jax.block_until_ready(gru_actor_reference(obs_seq, eps, params))

    # f32 path, single batch block (v5e/v6e default).
    out = jax.block_until_ready(gru_actor_forward(obs_seq, eps, params))
    assert out.shape == (B, T, A), out.shape
    np.testing.assert_allclose(np.asarray(out), np.asarray(ref), rtol=2e-3, atol=2e-3)
    np.testing.assert_allclose(np.asarray(out).sum(-1), np.ones((B, T)), rtol=0, atol=1e-3)

    # f32 path, two batch blocks (v7x megacore sharding layout).
    out2 = jax.block_until_ready(
        gru_actor_forward(obs_seq, eps, params, b_block=B // 2))
    np.testing.assert_allclose(np.asarray(out2), np.asarray(out), rtol=1e-6, atol=1e-6)

    # bf16 matmul-operand path (v6e/v7x); elementwise math stays f32 (v5e-safe).
    out_bf16 = jax.block_until_ready(
        gru_actor_forward(obs_seq, eps, params, matmul_dtype=jnp.bfloat16))
    assert out_bf16.shape == (B, T, A)
    np.testing.assert_allclose(np.asarray(out_bf16), np.asarray(ref), rtol=5e-2, atol=3e-2)
    np.testing.assert_allclose(np.asarray(out_bf16).sum(-1), np.ones((B, T)), rtol=0, atol=1e-3)

    print("KERNEL_OK")
</pallas_src>

<mosaic_0001>
module attributes {stable_mosaic.version = 11 : i64} {
  func.func @_gru_actor_kernel(%arg0: i32, %arg1: memref<1xf32, #tpu.memory_space<smem>>, %arg2: memref<32x16xf32, #tpu.memory_space<vmem>>, %arg3: memref<16x96xf32, #tpu.memory_space<vmem>>, %arg4: memref<32x96xf32, #tpu.memory_space<vmem>>, %arg5: memref<1x96xf32, #tpu.memory_space<vmem>>, %arg6: memref<1x32xf32, #tpu.memory_space<vmem>>, %arg7: memref<32x8xf32, #tpu.memory_space<vmem>>, %arg8: memref<1x8xf32, #tpu.memory_space<vmem>>, %arg9: memref<32x8xf32, #tpu.memory_space<vmem>>, %arg10: memref<32x96xf32, #tpu.memory_space<vmem>>) attributes {dimension_semantics = [#tpu.dimension_semantics<parallel>], iteration_bounds = array<i64: 1>, scalar_prefetch = 0 : i64, scratch_operands = 1 : i64, tpu.core_type = #tpu.core_type<tc>, window_params = [{transform_indices = @transform_0, window_bounds = array<i64: 1>}, {transform_indices = @transform_1, window_bounds = array<i64: 32, 16>}, {pipeline_mode = #tpu.pipeline_mode<synchronous>, transform_indices = @transform_2, window_bounds = array<i64: 16, 96>}, {pipeline_mode = #tpu.pipeline_mode<synchronous>, transform_indices = @transform_3, window_bounds = array<i64: 32, 96>}, {pipeline_mode = #tpu.pipeline_mode<synchronous>, transform_indices = @transform_4, window_bounds = array<i64: 1, 96>}, {pipeline_mode = #tpu.pipeline_mode<synchronous>, transform_indices = @transform_5, window_bounds = array<i64: 1, 32>}, {pipeline_mode = #tpu.pipeline_mode<synchronous>, transform_indices = @transform_6, window_bounds = array<i64: 32, 8>}, {pipeline_mode = #tpu.pipeline_mode<synchronous>, transform_indices = @transform_7, window_bounds = array<i64: 1, 8>}, {transform_indices = @transform_8, window_bounds = array<i64: 32, 8>}]} {
    %c0 = arith.constant 0 : index
    %c0_0 = arith.constant 0 : index
    %0 = vector.load %arg2[%c0, %c0_0] : memref<32x16xf32, #tpu.memory_space<vmem>>, vector<32x16xf32>
    %c0_1 = arith.constant 0 : index
    %c0_2 = arith.constant 0 : index
    %1 = vector.load %arg3[%c0_1, %c0_2] : memref<16x96xf32, #tpu.memory_space<vmem>>, vector<16x96xf32>
    %cst = arith.constant dense<0.000000e+00> : vector<32x96xf32>
    %2 = tpu.matmul %0, %1, %cst {dimension_numbers = #tpu.dot_dimension_numbers<[1], [0], [0], [1], [0, 0, 1, 1], [], []>} : vector<32x16xf32>, vector<16x96xf32>, vector<32x96xf32> -> vector<32x96xf32>
    %c0_3 = arith.constant 0 : index
    %c0_4 = arith.constant 0 : index
    %3 = vector.load %arg5[%c0_3, %c0_4] : memref<1x96xf32, #tpu.memory_space<vmem>>, vector<1x96xf32>
    %4 = vector.broadcast %3 : vector<1x96xf32> to vector<32x96xf32>
    %5 = arith.addf %2, %4 : vector<32x96xf32>
    %c0_5 = arith.constant 0 : index
    %c0_6 = arith.constant 0 : index
    %6 = vector.load %arg10[%c0_5, %c0_6] : memref<32x96xf32, #tpu.memory_space<vmem>>, vector<32x96xf32>
    tpu.vector_store %arg10[%c0_5, %c0_6], %5 {strides = array<i32>} : memref<32x96xf32, #tpu.memory_space<vmem>>, vector<32x96xf32>,
    %c0_7 = arith.constant 0 : index
    %c0_8 = arith.constant 0 : index
    %7 = vector.load %arg4[%c0_7, %c0_8] : memref<32x96xf32, #tpu.memory_space<vmem>>, vector<32x96xf32>
    %c0_9 = arith.constant 0 : index
    %c0_10 = arith.constant 0 : index
    %8 = vector.load %arg6[%c0_9, %c0_10] : memref<1x32xf32, #tpu.memory_space<vmem>>, vector<1x32xf32>
    %cst_11 = arith.constant 0.000000e+00 : f32
    %9 = vector.broadcast %cst_11 : f32 to vector<4x32xf32>
    %c0_12 = arith.constant 0 : index
    %c0_13 = arith.constant 0 : index
    %10 = vector.load %arg10[%c0_12, %c0_13] : memref<32x96xf32, #tpu.memory_space<vmem>>, vector<4x96xf32>
    %cst_14 = arith.constant dense<0.000000e+00> : vector<4x96xf32>
    %11 = tpu.matmul %9, %7, %cst_14 {dimension_numbers = #tpu.dot_dimension_numbers<[1], [0], [0], [1], [0, 0, 1, 1], [], []>} : vector<4x32xf32>, vector<32x96xf32>, vector<4x96xf32> -> vector<4x96xf32>
    %12 = vector.extract_strided_slice %10 {offsets = [0, 0], sizes = [4, 64], strides = [1, 1]} : vector<4x96xf32> to vector<4x64xf32>
    %13 = vector.extract_strided_slice %11 {offsets = [0, 0], sizes = [4, 64], strides = [1, 1]} : vector<4x96xf32> to vector<4x64xf32>
    %14 = arith.addf %12, %13 : vector<4x64xf32>
    %15 = arith.negf %14 : vector<4x64xf32>
    %16 = math.exp %15 : vector<4x64xf32>
    %cst_15 = arith.constant 1.000000e+00 : f32
    %17 = vector.broadcast %cst_15 : f32 to vector<4x64xf32>
    %18 = arith.addf %17, %16 : vector<4x64xf32>
    %19 = arith.divf %17, %18 : vector<4x64xf32>
    %20 = vector.extract_strided_slice %19 {offsets = [0, 0], sizes = [4, 32], strides = [1, 1]} : vector<4x64xf32> to vector<4x32xf32>
    %21 = vector.extract_strided_slice %19 {offsets = [0, 32], sizes = [4, 32], strides = [1, 1]} : vector<4x64xf32> to vector<4x32xf32>
    %22 = vector.extract_strided_slice %10 {offsets = [0, 64], sizes = [4, 32], strides = [1, 1]} : vector<4x96xf32> to vector<4x32xf32>
    %23 = vector.extract_strided_slice %11 {offsets = [0, 64], sizes = [4, 32], strides = [1, 1]} : vector<4x96xf32> to vector<4x32xf32>
    %24 = vector.broadcast %8 : vector<1x32xf32> to vector<4x32xf32>
    %25 = arith.addf %23, %24 : vector<4x32xf32>
    %26 = arith.mulf %20, %25 : vector<4x32xf32>
    %27 = arith.addf %22, %26 : vector<4x32xf32>
    %28 = math.tanh %27 : vector<4x32xf32>
    %cst_16 = arith.constant 1.000000e+00 : f32
    %29 = vector.broadcast %cst_16 : f32 to vector<4x32xf32>
    %30 = arith.subf %29, %21 : vector<4x32xf32>
    %31 = arith.mulf %30, %28 : vector<4x32xf32>
    %32 = arith.mulf %21, %9 : vector<4x32xf32>
    %33 = arith.addf %31, %32 : vector<4x32xf32>
    %c4 = arith.constant 4 : index
    %c0_17 = arith.constant 0 : index
    %34 = vector.load %arg10[%c4, %c0_17] : memref<32x96xf32, #tpu.memory_space<vmem>>, vector<4x96xf32>
    %cst_18 = arith.constant dense<0.000000e+00> : vector<4x96xf32>
    %35 = tpu.matmul %33, %7, %cst_18 {dimension_numbers = #tpu.dot_dimension_numbers<[1], [0], [0], [1], [0, 0, 1, 1], [], []>} : vector<4x32xf32>, vector<32x96xf32>, vector<4x96xf32> -> vector<4x96xf32>
    %36 = vector.extract_strided_slice %34 {offsets = [0, 0], sizes = [4, 64], strides = [1, 1]} : vector<4x96xf32> to vector<4x64xf32>
    %37 = vector.extract_strided_slice %35 {offsets = [0, 0], sizes = [4, 64], strides = [1, 1]} : vector<4x96xf32> to vector<4x64xf32>
    %38 = arith.addf %36, %37 : vector<4x64xf32>
    %39 = arith.negf %38 : vector<4x64xf32>
    %40 = math.exp %39 : vector<4x64xf32>
    %cst_19 = arith.constant 1.000000e+00 : f32
    %41 = vector.broadcast %cst_19 : f32 to vector<4x64xf32>
    %42 = arith.addf %41, %40 : vector<4x64xf32>
    %43 = arith.divf %41, %42 : vector<4x64xf32>
    %44 = vector.extract_strided_slice %43 {offsets = [0, 0], sizes = [4, 32], strides = [1, 1]} : vector<4x64xf32> to vector<4x32xf32>
    %45 = vector.extract_strided_slice %43 {offsets = [0, 32], sizes = [4, 32], strides = [1, 1]} : vector<4x64xf32> to vector<4x32xf32>
    %46 = vector.extract_strided_slice %34 {offsets = [0, 64], sizes = [4, 32], strides = [1, 1]} : vector<4x96xf32> to vector<4x32xf32>
    %47 = vector.extract_strided_slice %35 {offsets = [0, 64], sizes = [4, 32], strides = [1, 1]} : vector<4x96xf32> to vector<4x32xf32>
    %48 = vector.broadcast %8 : vector<1x32xf32> to vector<4x32xf32>
    %49 = arith.addf %47, %48 : vector<4x32xf32>
    %50 = arith.mulf %44, %49 : vector<4x32xf32>
    %51 = arith.addf %46, %50 : vector<4x32xf32>
    %52 = math.tanh %51 : vector<4x32xf32>
    %cst_20 = arith.constant 1.000000e+00 : f32
    %53 = vector.broadcast %cst_20 : f32 to vector<4x32xf32>
    %54 = arith.subf %53, %45 : vector<4x32xf32>
    %55 = arith.mulf %54, %52 : vector<4x32xf32>
    %56 = arith.mulf %45, %33 : vector<4x32xf32>
    %57 = arith.addf %55, %56 : vector<4x32xf32>
    %c8 = arith.constant 8 : index
    %c0_21 = arith.constant 0 : index
    %58 = vector.load %arg10[%c8, %c0_21] : memref<32x96xf32, #tpu.memory_space<vmem>>, vector<4x96xf32>
    %cst_22 = arith.constant dense<0.000000e+00> : vector<4x96xf32>
    %59 = tpu.matmul %57, %7, %cst_22 {dimension_numbers = #tpu.dot_dimension_numbers<[1], [0], [0], [1], [0, 0, 1, 1], [], []>} : vector<4x32xf32>, vector<32x96xf32>, vector<4x96xf32> -> vector<4x96xf32>
    %60 = vector.extract_strided_slice %58 {offsets = [0, 0], sizes = [4, 64], strides = [1, 1]} : vector<4x96xf32> to vector<4x64xf32>
    %61 = vector.extract_strided_slice %59 {offsets = [0, 0], sizes = [4, 64], strides = [1, 1]} : vector<4x96xf32> to vector<4x64xf32>
    %62 = arith.addf %60, %61 : vector<4x64xf32>
    %63 = arith.negf %62 : vector<4x64xf32>
    %64 = math.exp %63 : vector<4x64xf32>
    %cst_23 = arith.constant 1.000000e+00 : f32
    %65 = vector.broadcast %cst_23 : f32 to vector<4x64xf32>
    %66 = arith.addf %65, %64 : vector<4x64xf32>
    %67 = arith.divf %65, %66 : vector<4x64xf32>
    %68 = vector.extract_strided_slice %67 {offsets = [0, 0], sizes = [4, 32], strides = [1, 1]} : vector<4x64xf32> to vector<4x32xf32>
    %69 = vector.extract_strided_slice %67 {offsets = [0, 32], sizes = [4, 32], strides = [1, 1]} : vector<4x64xf32> to vector<4x32xf32>
    %70 = vector.extract_strided_slice %58 {offsets = [0, 64], sizes = [4, 32], strides = [1, 1]} : vector<4x96xf32> to vector<4x32xf32>
    %71 = vector.extract_strided_slice %59 {offsets = [0, 64], sizes = [4, 32], strides = [1, 1]} : vector<4x96xf32> to vector<4x32xf32>
    %72 = vector.broadcast %8 : vector<1x32xf32> to vector<4x32xf32>
    %73 = arith.addf %71, %72 : vector<4x32xf32>
    %74 = arith.mulf %68, %73 : vector<4x32xf32>
    %75 = arith.addf %70, %74 : vector<4x32xf32>
    %76 = math.tanh %75 : vector<4x32xf32>
    %cst_24 = arith.constant 1.000000e+00 : f32
    %77 = vector.broadcast %cst_24 : f32 to vector<4x32xf32>
    %78 = arith.subf %77, %69 : vector<4x32xf32>
    %79 = arith.mulf %78, %76 : vector<4x32xf32>
    %80 = arith.mulf %69, %57 : vector<4x32xf32>
    %81 = arith.addf %79, %80 : vector<4x32xf32>
    %c12 = arith.constant 12 : index
    %c0_25 = arith.constant 0 : index
    %82 = vector.load %arg10[%c12, %c0_25] : memref<32x96xf32, #tpu.memory_space<vmem>>, vector<4x96xf32>
    %cst_26 = arith.constant dense<0.000000e+00> : vector<4x96xf32>
    %83 = tpu.matmul %81, %7, %cst_26 {dimension_numbers = #tpu.dot_dimension_numbers<[1], [0], [0], [1], [0, 0, 1, 1], [], []>} : vector<4x32xf32>, vector<32x96xf32>, vector<4x96xf32> -> vector<4x96xf32>
    %84 = vector.extract_strided_slice %82 {offsets = [0, 0], sizes = [4, 64], strides = [1, 1]} : vector<4x96xf32> to vector<4x64xf32>
    %85 = vector.extract_strided_slice %83 {offsets = [0, 0], sizes = [4, 64], strides = [1, 1]} : vector<4x96xf32> to vector<4x64xf32>
    %86 = arith.addf %84, %85 : vector<4x64xf32>
    %87 = arith.negf %86 : vector<4x64xf32>
    %88 = math.exp %87 : vector<4x64xf32>
    %cst_27 = arith.constant 1.000000e+00 : f32
    %89 = vector.broadcast %cst_27 : f32 to vector<4x64xf32>
    %90 = arith.addf %89, %88 : vector<4x64xf32>
    %91 = arith.divf %89, %90 : vector<4x64xf32>
    %92 = vector.extract_strided_slice %91 {offsets = [0, 0], sizes = [4, 32], strides = [1, 1]} : vector<4x64xf32> to vector<4x32xf32>
    %93 = vector.extract_strided_slice %91 {offsets = [0, 32], sizes = [4, 32], strides = [1, 1]} : vector<4x64xf32> to vector<4x32xf32>
    %94 = vector.extract_strided_slice %82 {offsets = [0, 64], sizes = [4, 32], strides = [1, 1]} : vector<4x96xf32> to vector<4x32xf32>
    %95 = vector.extract_strided_slice %83 {offsets = [0, 64], sizes = [4, 32], strides = [1, 1]} : vector<4x96xf32> to vector<4x32xf32>
    %96 = vector.broadcast %8 : vector<1x32xf32> to vector<4x32xf32>
    %97 = arith.addf %95, %96 : vector<4x32xf32>
    %98 = arith.mulf %92, %97 : vector<4x32xf32>
    %99 = arith.addf %94, %98 : vector<4x32xf32>
    %100 = math.tanh %99 : vector<4x32xf32>
    %cst_28 = arith.constant 1.000000e+00 : f32
    %101 = vector.broadcast %cst_28 : f32 to vector<4x32xf32>
    %102 = arith.subf %101, %93 : vector<4x32xf32>
    %103 = arith.mulf %102, %100 : vector<4x32xf32>
    %104 = arith.mulf %93, %81 : vector<4x32xf32>
    %105 = arith.addf %103, %104 : vector<4x32xf32>
    %c16 = arith.constant 16 : index
    %c0_29 = arith.constant 0 : index
    %106 = vector.load %arg10[%c16, %c0_29] : memref<32x96xf32, #tpu.memory_space<vmem>>, vector<4x96xf32>
    %cst_30 = arith.constant dense<0.000000e+00> : vector<4x96xf32>
    %107 = tpu.matmul %105, %7, %cst_30 {dimension_numbers = #tpu.dot_dimension_numbers<[1], [0], [0], [1], [0, 0, 1, 1], [], []>} : vector<4x32xf32>, vector<32x96xf32>, vector<4x96xf32> -> vector<4x96xf32>
    %108 = vector.extract_strided_slice %106 {offsets = [0, 0], sizes = [4, 64], strides = [1, 1]} : vector<4x96xf32> to vector<4x64xf32>
    %109 = vector.extract_strided_slice %107 {offsets = [0, 0], sizes = [4, 64], strides = [1, 1]} : vector<4x96xf32> to vector<4x64xf32>
    %110 = arith.addf %108, %109 : vector<4x64xf32>
    %111 = arith.negf %110 : vector<4x64xf32>
    %112 = math.exp %111 : vector<4x64xf32>
    %cst_31 = arith.constant 1.000000e+00 : f32
    %113 = vector.broadcast %cst_31 : f32 to vector<4x64xf32>
    %114 = arith.addf %113, %112 : vector<4x64xf32>
    %115 = arith.divf %113, %114 : vector<4x64xf32>
    %116 = vector.extract_strided_slice %115 {offsets = [0, 0], sizes = [4, 32], strides = [1, 1]} : vector<4x64xf32> to vector<4x32xf32>
    %117 = vector.extract_strided_slice %115 {offsets = [0, 32], sizes = [4, 32], strides = [1, 1]} : vector<4x64xf32> to vector<4x32xf32>
    %118 = vector.extract_strided_slice %106 {offsets = [0, 64], sizes = [4, 32], strides = [1, 1]} : vector<4x96xf32> to vector<4x32xf32>
    %119 = vector.extract_strided_slice %107 {offsets = [0, 64], sizes = [4, 32], strides = [1, 1]} : vector<4x96xf32> to vector<4x32xf32>
    %120 = vector.broadcast %8 : vector<1x32xf32> to vector<4x32xf32>
    %121 = arith.addf %119, %120 : vector<4x32xf32>
    %122 = arith.mulf %116, %121 : vector<4x32xf32>
    %123 = arith.addf %118, %122 : vector<4x32xf32>
    %124 = math.tanh %123 : vector<4x32xf32>
    %cst_32 = arith.constant 1.000000e+00 : f32
    %125 = vector.broadcast %cst_32 : f32 to vector<4x32xf32>
    %126 = arith.subf %125, %117 : vector<4x32xf32>
    %127 = arith.mulf %126, %124 : vector<4x32xf32>
    %128 = arith.mulf %117, %105 : vector<4x32xf32>
    %129 = arith.addf %127, %128 : vector<4x32xf32>
    %c20 = arith.constant 20 : index
    %c0_33 = arith.constant 0 : index
    %130 = vector.load %arg10[%c20, %c0_33] : memref<32x96xf32, #tpu.memory_space<vmem>>, vector<4x96xf32>
    %cst_34 = arith.constant dense<0.000000e+00> : vector<4x96xf32>
    %131 = tpu.matmul %129, %7, %cst_34 {dimension_numbers = #tpu.dot_dimension_numbers<[1], [0], [0], [1], [0, 0, 1, 1], [], []>} : vector<4x32xf32>, vector<32x96xf32>, vector<4x96xf32> -> vector<4x96xf32>
    %132 = vector.extract_strided_slice %130 {offsets = [0, 0], sizes = [4, 64], strides = [1, 1]} : vector<4x96xf32> to vector<4x64xf32>
    %133 = vector.extract_strided_slice %131 {offsets = [0, 0], sizes = [4, 64], strides = [1, 1]} : vector<4x96xf32> to vector<4x64xf32>
    %134 = arith.addf %132, %133 : vector<4x64xf32>
    %135 = arith.negf %134 : vector<4x64xf32>
    %136 = math.exp %135 : vector<4x64xf32>
    %cst_35 = arith.constant 1.000000e+00 : f32
    %137 = vector.broadcast %cst_35 : f32 to vector<4x64xf32>
    %138 = arith.addf %137, %136 : vector<4x64xf32>
    %139 = arith.divf %137, %138 : vector<4x64xf32>
    %140 = vector.extract_strided_slice %139 {offsets = [0, 0], sizes = [4, 32], strides = [1, 1]} : vector<4x64xf32> to vector<4x32xf32>
    %141 = vector.extract_strided_slice %139 {offsets = [0, 32], sizes = [4, 32], strides = [1, 1]} : vector<4x64xf32> to vector<4x32xf32>
    %142 = vector.extract_strided_slice %130 {offsets = [0, 64], sizes = [4, 32], strides = [1, 1]} : vector<4x96xf32> to vector<4x32xf32>
    %143 = vector.extract_strided_slice %131 {offsets = [0, 64], sizes = [4, 32], strides = [1, 1]} : vector<4x96xf32> to vector<4x32xf32>
    %144 = vector.broadcast %8 : vector<1x32xf32> to vector<4x32xf32>
    %145 = arith.addf %143, %144 : vector<4x32xf32>
    %146 = arith.mulf %140, %145 : vector<4x32xf32>
    %147 = arith.addf %142, %146 : vector<4x32xf32>
    %148 = math.tanh %147 : vector<4x32xf32>
    %cst_36 = arith.constant 1.000000e+00 : f32
    %149 = vector.broadcast %cst_36 : f32 to vector<4x32xf32>
    %150 = arith.subf %149, %141 : vector<4x32xf32>
    %151 = arith.mulf %150, %148 : vector<4x32xf32>
    %152 = arith.mulf %141, %129 : vector<4x32xf32>
    %153 = arith.addf %151, %152 : vector<4x32xf32>
    %c24 = arith.constant 24 : index
    %c0_37 = arith.constant 0 : index
    %154 = vector.load %arg10[%c24, %c0_37] : memref<32x96xf32, #tpu.memory_space<vmem>>, vector<4x96xf32>
    %cst_38 = arith.constant dense<0.000000e+00> : vector<4x96xf32>
    %155 = tpu.matmul %153, %7, %cst_38 {dimension_numbers = #tpu.dot_dimension_numbers<[1], [0], [0], [1], [0, 0, 1, 1], [], []>} : vector<4x32xf32>, vector<32x96xf32>, vector<4x96xf32> -> vector<4x96xf32>
    %156 = vector.extract_strided_slice %154 {offsets = [0, 0], sizes = [4, 64], strides = [1, 1]} : vector<4x96xf32> to vector<4x64xf32>
    %157 = vector.extract_strided_slice %155 {offsets = [0, 0], sizes = [4, 64], strides = [1, 1]} : vector<4x96xf32> to vector<4x64xf32>
    %158 = arith.addf %156, %157 : vector<4x64xf32>
    %159 = arith.negf %158 : vector<4x64xf32>
    %160 = math.exp %159 : vector<4x64xf32>
    %cst_39 = arith.constant 1.000000e+00 : f32
    %161 = vector.broadcast %cst_39 : f32 to vector<4x64xf32>
    %162 = arith.addf %161, %160 : vector<4x64xf32>
    %163 = arith.divf %161, %162 : vector<4x64xf32>
    %164 = vector.extract_strided_slice %163 {offsets = [0, 0], sizes = [4, 32], strides = [1, 1]} : vector<4x64xf32> to vector<4x32xf32>
    %165 = vector.extract_strided_slice %163 {offsets = [0, 32], sizes = [4, 32], strides = [1, 1]} : vector<4x64xf32> to vector<4x32xf32>
    %166 = vector.extract_strided_slice %154 {offsets = [0, 64], sizes = [4, 32], strides = [1, 1]} : vector<4x96xf32> to vector<4x32xf32>
    %167 = vector.extract_strided_slice %155 {offsets = [0, 64], sizes = [4, 32], strides = [1, 1]} : vector<4x96xf32> to vector<4x32xf32>
    %168 = vector.broadcast %8 : vector<1x32xf32> to vector<4x32xf32>
    %169 = arith.addf %167, %168 : vector<4x32xf32>
    %170 = arith.mulf %164, %169 : vector<4x32xf32>
    %171 = arith.addf %166, %170 : vector<4x32xf32>
    %172 = math.tanh %171 : vector<4x32xf32>
    %cst_40 = arith.constant 1.000000e+00 : f32
    %173 = vector.broadcast %cst_40 : f32 to vector<4x32xf32>
    %174 = arith.subf %173, %165 : vector<4x32xf32>
    %175 = arith.mulf %174, %172 : vector<4x32xf32>
    %176 = arith.mulf %165, %153 : vector<4x32xf32>
    %177 = arith.addf %175, %176 : vector<4x32xf32>
    %c28 = arith.constant 28 : index
    %c0_41 = arith.constant 0 : index
    %178 = vector.load %arg10[%c28, %c0_41] : memref<32x96xf32, #tpu.memory_space<vmem>>, vector<4x96xf32>
    %cst_42 = arith.constant dense<0.000000e+00> : vector<4x96xf32>
    %179 = tpu.matmul %177, %7, %cst_42 {dimension_numbers = #tpu.dot_dimension_numbers<[1], [0], [0], [1], [0, 0, 1, 1], [], []>} : vector<4x32xf32>, vector<32x96xf32>, vector<4x96xf32> -> vector<4x96xf32>
    %180 = vector.extract_strided_slice %178 {offsets = [0, 0], sizes = [4, 64], strides = [1, 1]} : vector<4x96xf32> to vector<4x64xf32>
    %181 = vector.extract_strided_slice %179 {offsets = [0, 0], sizes = [4, 64], strides = [1, 1]} : vector<4x96xf32> to vector<4x64xf32>
    %182 = arith.addf %180, %181 : vector<4x64xf32>
    %183 = arith.negf %182 : vector<4x64xf32>
    %184 = math.exp %183 : vector<4x64xf32>
    %cst_43 = arith.constant 1.000000e+00 : f32
    %185 = vector.broadcast %cst_43 : f32 to vector<4x64xf32>
    %186 = arith.addf %185, %184 : vector<4x64xf32>
    %187 = arith.divf %185, %186 : vector<4x64xf32>
    %188 = vector.extract_strided_slice %187 {offsets = [0, 0], sizes = [4, 32], strides = [1, 1]} : vector<4x64xf32> to vector<4x32xf32>
    %189 = vector.extract_strided_slice %187 {offsets = [0, 32], sizes = [4, 32], strides = [1, 1]} : vector<4x64xf32> to vector<4x32xf32>
    %190 = vector.extract_strided_slice %178 {offsets = [0, 64], sizes = [4, 32], strides = [1, 1]} : vector<4x96xf32> to vector<4x32xf32>
    %191 = vector.extract_strided_slice %179 {offsets = [0, 64], sizes = [4, 32], strides = [1, 1]} : vector<4x96xf32> to vector<4x32xf32>
    %192 = vector.broadcast %8 : vector<1x32xf32> to vector<4x32xf32>
    %193 = arith.addf %191, %192 : vector<4x32xf32>
    %194 = arith.mulf %188, %193 : vector<4x32xf32>
    %195 = arith.addf %190, %194 : vector<4x32xf32>
    %196 = math.tanh %195 : vector<4x32xf32>
    %cst_44 = arith.constant 1.000000e+00 : f32
    %197 = vector.broadcast %cst_44 : f32 to vector<4x32xf32>
    %198 = arith.subf %197, %189 : vector<4x32xf32>
    %199 = arith.mulf %198, %196 : vector<4x32xf32>
    %200 = arith.mulf %189, %177 : vector<4x32xf32>
    %201 = arith.addf %199, %200 : vector<4x32xf32>
    %202 = tpu.concatenate %33, %57, %81, %105, %129, %153, %177, %201 in 0 : vector<4x32xf32>, vector<4x32xf32>, vector<4x32xf32>, vector<4x32xf32>, vector<4x32xf32>, vector<4x32xf32>, vector<4x32xf32>, vector<4x32xf32> -> vector<32x32xf32>
    %c0_45 = arith.constant 0 : index
    %c0_46 = arith.constant 0 : index
    %203 = vector.load %arg7[%c0_45, %c0_46] : memref<32x8xf32, #tpu.memory_space<vmem>>, vector<32x8xf32>
    %cst_47 = arith.constant dense<0.000000e+00> : vector<32x8xf32>
    %204 = tpu.matmul %202, %203, %cst_47 {dimension_numbers = #tpu.dot_dimension_numbers<[1], [0], [0], [1], [0, 0, 1, 1], [], []>} : vector<32x32xf32>, vector<32x8xf32>, vector<32x8xf32> -> vector<32x8xf32>
    %c0_48 = arith.constant 0 : index
    %c0_49 = arith.constant 0 : index
    %205 = vector.load %arg8[%c0_48, %c0_49] : memref<1x8xf32, #tpu.memory_space<vmem>>, vector<1x8xf32>
    %206 = vector.broadcast %205 : vector<1x8xf32> to vector<32x8xf32>
    %207 = arith.addf %204, %206 : vector<32x8xf32>
    %cst_50 = arith.constant dense<0xFF800000> : vector<32xf32>
    %208 = vector.multi_reduction <maximumf>, %207, %cst_50 [1] : vector<32x8xf32> to vector<32xf32>
    %209 = vector.shape_cast %208 : vector<32xf32> to vector<32x1xf32>
    %210 = vector.broadcast %209 : vector<32x1xf32> to vector<32x8xf32>
    %211 = arith.subf %207, %210 : vector<32x8xf32>
    %212 = math.exp %211 : vector<32x8xf32>
    %cst_51 = arith.constant dense<0.000000e+00> : vector<32xf32>
    %213 = vector.multi_reduction <add>, %212, %cst_51 [1] : vector<32x8xf32> to vector<32xf32>
    %214 = vector.shape_cast %213 : vector<32xf32> to vector<32x1xf32>
    %215 = vector.broadcast %214 : vector<32x1xf32> to vector<32x8xf32>
    %216 = arith.divf %212, %215 : vector<32x8xf32>
    %c0_52 = arith.constant 0 : index
    %217 = memref.load %arg1[%c0_52] : memref<1xf32, #tpu.memory_space<smem>>
    %cst_53 = arith.constant 1.000000e+00 : f32
    %218 = arith.subf %cst_53, %217 : f32
    %219 = vector.broadcast %218 : f32 to vector<32x8xf32>
    %220 = arith.mulf %219, %216 : vector<32x8xf32>
    %cst_54 = arith.constant 8.000000e+00 : f32
    %221 = arith.divf %217, %cst_54 : f32
    %222 = vector.broadcast %221 : f32 to vector<32x8xf32>
    %223 = arith.addf %220, %222 : vector<32x8xf32>
    %c0_55 = arith.constant 0 : index
    %c0_56 = arith.constant 0 : index
    %224 = vector.load %arg9[%c0_55, %c0_56] : memref<32x8xf32, #tpu.memory_space<vmem>>, vector<32x8xf32>
    tpu.vector_store %arg9[%c0_55, %c0_56], %223 {strides = array<i32>} : memref<32x8xf32, #tpu.memory_space<vmem>>, vector<32x8xf32>,
    return
  }
  func.func @transform_0(%arg0: i32) -> i32 {
    %c0_i32 = arith.constant 0 : i32
    %c0_i32_0 = arith.constant 0 : i32
    return %c0_i32 : i32
  }
  func.func @transform_1(%arg0: i32) -> (i32, i32) {
    %c0_i32 = arith.constant 0 : i32
    %c0_i32_0 = arith.constant 0 : i32
    return %arg0, %c0_i32 : i32, i32
  }
  func.func @transform_2(%arg0: i32) -> (i32, i32) {
    %c0_i32 = arith.constant 0 : i32
    %c0_i32_0 = arith.constant 0 : i32
    %c0_i32_1 = arith.constant 0 : i32
    return %c0_i32, %c0_i32_0 : i32, i32
  }
  func.func @transform_3(%arg0: i32) -> (i32, i32) {
    %c0_i32 = arith.constant 0 : i32
    %c0_i32_0 = arith.constant 0 : i32
    %c0_i32_1 = arith.constant 0 : i32
    return %c0_i32, %c0_i32_0 : i32, i32
  }
  func.func @transform_4(%arg0: i32) -> (i32, i32) {
    %c0_i32 = arith.constant 0 : i32
    %c0_i32_0 = arith.constant 0 : i32
    %c0_i32_1 = arith.constant 0 : i32
    return %c0_i32, %c0_i32_0 : i32, i32
  }
  func.func @transform_5(%arg0: i32) -> (i32, i32) {
    %c0_i32 = arith.constant 0 : i32
    %c0_i32_0 = arith.constant 0 : i32
    %c0_i32_1 = arith.constant 0 : i32
    return %c0_i32, %c0_i32_0 : i32, i32
  }
  func.func @transform_6(%arg0: i32) -> (i32, i32) {
    %c0_i32 = arith.constant 0 : i32
    %c0_i32_0 = arith.constant 0 : i32
    %c0_i32_1 = arith.constant 0 : i32
    return %c0_i32, %c0_i32_0 : i32, i32
  }
  func.func @transform_7(%arg0: i32) -> (i32, i32) {
    %c0_i32 = arith.constant 0 : i32
    %c0_i32_0 = arith.constant 0 : i32
    %c0_i32_1 = arith.constant 0 : i32
    return %c0_i32, %c0_i32_0 : i32, i32
  }
  func.func @transform_8(%arg0: i32) -> (i32, i32) {
    %c0_i32 = arith.constant 0 : i32
    %c0_i32_0 = arith.constant 0 : i32
    return %arg0, %c0_i32 : i32, i32
  }
}

</mosaic_0001>

<llo_original>
// kernel: tpu_custom_call.1
$region0: #{tpu_custom_call.1}
  #allocation0 [shape = 'u32[]', space=smem, size = 0x4, offset = 0x4, fixed_abs, tag = 'smem constant byte address 0x4 - core index']
  #allocation1 [shape = 'u32[144,128]{1,0:T(1,128)}', space=vmem, size = 0x12000, scoped, tag = 'internal scratch']
  #allocation2 [shape = 'f32[32,96]{1,0:T(8,128)}', space=vmem, size = 0x4000, scoped, tag = 'scratch operand']
  #allocation3 [shape = 'f32[1]{0:T(128)S(6)}', space=smem, size = 0x200, scoped, tag = 'scoped memory for tpu_custom_call.1']
  %s0 = inlined_call_operand.<no memory space> [shape: f32[1], index: 0, kind: input, shape index: {}]
  %s1 = inlined_call_operand.vmem [shape: f32[32,16], index: 1, kind: input, shape index: {}]
  %s2 = inlined_call_operand.vmem [shape: f32[16,96], index: 2, kind: input, shape index: {}]
  %s3 = inlined_call_operand.vmem [shape: f32[32,96], index: 3, kind: input, shape index: {}]
  %s4 = inlined_call_operand.vmem [shape: f32[1,96], index: 4, kind: input, shape index: {}]
  %s5 = inlined_call_operand.vmem [shape: f32[1,32], index: 5, kind: input, shape index: {}]
  %s6 = inlined_call_operand.vmem [shape: f32[32,8], index: 6, kind: input, shape index: {}]
  %s7 = inlined_call_operand.vmem [shape: f32[1,8], index: 7, kind: input, shape index: {}]
  %s8 = inlined_call_operand.vmem [shape: f32[32,8], index: 8, kind: output, shape index: {}]
  %s9 = sld [smem:[#allocation0]]
  $region42: #{tpu_custom_call.1} parent=0
    _
  %s11 = ssub.s32 1, %s9
  %s12 = scalar_select 0, %s11, %s9
  %13 = sst [smem:[#allocation3]] %s0
  // Predicated region
  $region2: #{tpu_custom_call.1} parent=0 // pred_check
    _
  $region3: #{tpu_custom_call.1} parent=0 // pred_check_branch
    %15 = sbr.rel (0) target = $region5
  $region4: #{tpu_custom_call.1} parent=0 // pred_region
    _
  $region5: #{tpu_custom_call.1} parent=0 // pred_fallthru
    _
  // Predicated region
  $region6: #{tpu_custom_call.1} parent=0 // pred_check
    _
  $region7: #{tpu_custom_call.1} parent=0 // pred_check_branch
    %17 = sbr.rel (0) target = $region9
  $region8: #{tpu_custom_call.1} parent=0 // pred_region
    _
  $region9: #{tpu_custom_call.1} parent=0 // pred_fallthru
    _
  // Predicated region
  $region10: #{tpu_custom_call.1} parent=0 // pred_check
    _
  $region11: #{tpu_custom_call.1} parent=0 // pred_check_branch
    %19 = sbr.rel (0) target = $region13
  $region12: #{tpu_custom_call.1} parent=0 // pred_region
    _
  $region13: #{tpu_custom_call.1} parent=0 // pred_fallthru
    _
  // Predicated region
  $region14: #{tpu_custom_call.1} parent=0 // pred_check
    _
  $region15: #{tpu_custom_call.1} parent=0 // pred_check_branch
    %21 = sbr.rel (0) target = $region17
  $region16: #{tpu_custom_call.1} parent=0 // pred_region
    _
  $region17: #{tpu_custom_call.1} parent=0 // pred_fallthru
    _
  // Predicated region
  $region18: #{tpu_custom_call.1} parent=0 // pred_check
    _
  $region19: #{tpu_custom_call.1} parent=0 // pred_check_branch
    %23 = sbr.rel (0) target = $region21
  $region20: #{tpu_custom_call.1} parent=0 // pred_region
    _
  $region21: #{tpu_custom_call.1} parent=0 // pred_fallthru
    _
  // Predicated region
  $region22: #{tpu_custom_call.1} parent=0 // pred_check
    _
  $region23: #{tpu_custom_call.1} parent=0 // pred_check_branch
    %25 = sbr.rel (0) target = $region25
  $region24: #{tpu_custom_call.1} parent=0 // pred_region
    _
  $region25: #{tpu_custom_call.1} parent=0 // pred_fallthru
    _
  // Predicated region
  $region26: #{tpu_custom_call.1} parent=0 // pred_check
    _
  $region27: #{tpu_custom_call.1} parent=0 // pred_check_branch
    %27 = sbr.rel (0) target = $region29
  $region28: #{tpu_custom_call.1} parent=0 // pred_region
    _
  $region29: #{tpu_custom_call.1} parent=0 // pred_fallthru
    _
  // Predicated region
  $region30: #{tpu_custom_call.1} parent=0 // pred_check
    _
  $region31: #{tpu_custom_call.1} parent=0 // pred_check_branch
    %29 = sbr.rel (0) target = $region33
  $region32: #{tpu_custom_call.1} parent=0 // pred_region
    _
  $region33: #{tpu_custom_call.1} parent=0 // pred_fallthru
    _
  %v30 = vld [vmem:[%s1] sm:$0xff]
  %v31 = vld [vmem:[%s1 + $0x8] sm:$0xff]
  %v32 = vld [vmem:[%s1 + $0x10] sm:$0xff]
  %v33 = vld [vmem:[%s1 + $0x18] sm:$0xff]
  %v34 = vld [vmem:[%s2] sm:$0xff]
  %v35 = vld [vmem:[%s2 + $0x8] sm:$0xff]
  %v36 = vld [vmem:[%s4] sm:$0x1]
  %v38 = vlaneseq
  %v39 = vshrl.u32 %v38, 7
  %v40 = vsub.s32 0, %v39
  %v41 = vrot.slane %v36, %v40
  %vm43 = vcmask 130048
  %v45 = vsel %vm43, %v30, 0
  %v48 = vsel %vm43, %v31, 0
  %v51 = vsel %vm43, %v32, 0
  %v54 = vsel %vm43, %v33, 0
  %56 = vmatprep.subr.mxu0 0.0
  %57 = vmatpush1.msra.mxu0 0.0
  %58 = vmatprep.subr.mxu0 0.0
  %59 = vmatpush1.msra.mxu0 0.0
  %60 = vmatprep.subr.mxu0 0.0
  %61 = vmatpush1.msra.mxu0 0.0
  %62 = vmatprep.subr.mxu0 0.0
  %63 = vmatpush1.msra.mxu0 0.0
  %64 = vmatprep.subr.mxu0 0.0
  %65 = vmatpush1.msra.mxu0 0.0
  %66 = vmatprep.subr.mxu0 0.0
  %67 = vmatpush1.msra.mxu0 0.0
  %68 = vmatprep.subr.mxu0 0.0
  %69 = vmatpush1.msra.mxu0 0.0
  %70 = vmatprep.subr.mxu0 0.0
  %71 = vmatpush1.msra.mxu0 0.0
  %72 = vmatprep.subr.mxu0 0.0
  %73 = vmatpush1.msra.mxu0 0.0
  %74 = vmatprep.subr.mxu0 0.0
  %75 = vmatpush1.msra.mxu0 0.0
  %76 = vmatprep.subr.mxu0 0.0
  %77 = vmatpush1.msra.mxu0 0.0
  %78 = vmatprep.subr.mxu0 0.0
  %79 = vmatpush1.msra.mxu0 0.0
  %80 = vmatprep.subr.mxu0 0.0
  %81 = vmatpush1.msra.mxu0 0.0
  %82 = vmatprep.subr.mxu0 0.0
  %83 = vmatpush1.msra.mxu0 0.0
  %84 = vmatprep.subr.mxu0 0.0
  %85 = vmatpush1.msra.mxu0 %v35
  %86 = vmatprep.subr.mxu0 0.0
  %87 = vmatpush1.msra.mxu0 %v34
  %88 = vmatprep.subr.mxu0 0.0
  %89 = vmatpush2.msra.mxu0 0.0
  %90 = vmatprep.subr.mxu0 0.0
  %91 = vmatpush2.msra.mxu0 0.0
  %92 = vmatprep.subr.mxu0 0.0
  %93 = vmatpush2.msra.mxu0 0.0
  %94 = vmatprep.subr.mxu0 0.0
  %95 = vmatpush2.msra.mxu0 0.0
  %96 = vmatprep.subr.mxu0 0.0
  %97 = vmatpush2.msra.mxu0 0.0
  %98 = vmatprep.subr.mxu0 0.0
  %99 = vmatpush2.msra.mxu0 0.0
  %100 = vmatprep.subr.mxu0 0.0
  %101 = vmatpush2.msra.mxu0 0.0
  %102 = vmatprep.subr.mxu0 0.0
  %103 = vmatpush2.msra.mxu0 0.0
  %104 = vmatprep.subr.mxu0 0.0
  %105 = vmatpush2.msra.mxu0 0.0
  %106 = vmatprep.subr.mxu0 0.0
  %107 = vmatpush2.msra.mxu0 0.0
  %108 = vmatprep.subr.mxu0 0.0
  %109 = vmatpush2.msra.mxu0 0.0
  %110 = vmatprep.subr.mxu0 0.0
  %111 = vmatpush2.msra.mxu0 0.0
  %112 = vmatprep.subr.mxu0 0.0
  %113 = vmatpush2.msra.mxu0 0.0
  %114 = vmatprep.subr.mxu0 0.0
  %115 = vmatpush2.msra.mxu0 0.0
  %116 = vmatprep.subr.mxu0 0.0
  %117 = vmatpush2.msra.mxu0 0.0
  %118 = vmatprep.subr.mxu0 0.0
  %119 = vmatpush2.msra.mxu0 0.0
  %120 = vmatprep.mubr.f32.mxu0 0.0
  %121 = vmatmul.mubr.f32.gmra.mxu0 %v45
  %v122 = vpop.f32.mrf.mxu0
  %v123 = vadd.f32 %v41, %v122
  %v124 = vpop.f32.mrf.mxu0
  %125 = vmatprep.mubr.f32.mxu0 0.0
  %126 = vmatmul.mubr.f32.gmra.mxu0 %v48
  %v127 = vpop.f32.mrf.mxu0
  %v128 = vadd.f32 %v41, %v127
  %v129 = vpop.f32.mrf.mxu0
  %130 = vmatprep.mubr.f32.mxu0 0.0
  %131 = vmatmul.mubr.f32.gmra.mxu0 %v51
  %v132 = vpop.f32.mrf.mxu0
  %v133 = vadd.f32 %v41, %v132
  %v134 = vpop.f32.mrf.mxu0
  %135 = vmatprep.mubr.f32.mxu0 0.0
  %136 = vmatmul.mubr.f32.gmra.mxu0 %v54
  %v137 = vpop.f32.mrf.mxu0
  %v138 = vadd.f32 %v41, %v137
  %v139 = vpop.f32.mrf.mxu0
  %140 = vdwg.mxu0
  %vm141 = vcmask 785408
  %142 = vst.msk [vmem:[#allocation2] sm:$0xff] %vm141, %v123
  %143 = vst.msk [vmem:[#allocation2 + $0x8] sm:$0xff] %vm141, %v128
  %144 = vst.msk [vmem:[#allocation2 + $0x10] sm:$0xff] %vm141, %v133
  %145 = vst.msk [vmem:[#allocation2 + $0x18] sm:$0xff] %vm141, %v138
  %v146 = vld [vmem:[%s3] sm:$0xff]
  %v147 = vld [vmem:[%s3 + $0x8] sm:$0xff]
  %v148 = vld [vmem:[%s3 + $0x10] sm:$0xff]
  %v149 = vld [vmem:[%s3 + $0x18] sm:$0xff]
  %v150 = vld [vmem:[%s5] sm:$0x1]
  %v151 = vld [vmem:[#allocation2] sm:$0xf]
  %vm152 = vcmask 261120
  %v154 = vsel %vm152, 0.0, 0
  %156 = vmatprep.subr.mxu0 0.0
  %157 = vmatpush1.msra.mxu0 0.0
  %158 = vmatprep.subr.mxu0 0.0
  %159 = vmatpush1.msra.mxu0 0.0
  %160 = vmatprep.subr.mxu0 0.0
  %161 = vmatpush1.msra.mxu0 0.0
  %162 = vmatprep.subr.mxu0 0.0
  %163 = vmatpush1.msra.mxu0 0.0
  %164 = vmatprep.subr.mxu0 0.0
  %165 = vmatpush1.msra.mxu0 0.0
  %166 = vmatprep.subr.mxu0 0.0
  %167 = vmatpush1.msra.mxu0 0.0
  %168 = vmatprep.subr.mxu0 0.0
  %169 = vmatpush1.msra.mxu0 0.0
  %170 = vmatprep.subr.mxu0 0.0
  %171 = vmatpush1.msra.mxu0 0.0
  %172 = vmatprep.subr.mxu0 0.0
  %173 = vmatpush1.msra.mxu0 0.0
  %174 = vmatprep.subr.mxu0 0.0
  %175 = vmatpush1.msra.mxu0 0.0
  %176 = vmatprep.subr.mxu0 0.0
  %177 = vmatpush1.msra.mxu0 0.0
  %178 = vmatprep.subr.mxu0 0.0
  %179 = vmatpush1.msra.mxu0 0.0
  %180 = vmatprep.subr.mxu0 0.0
  %181 = vmatpush1.msra.mxu0 %v149
  %182 = vmatprep.subr.mxu0 0.0
  %183 = vmatpush1.msra.mxu0 %v148
  %184 = vmatprep.subr.mxu0 0.0
  %185 = vmatpush1.msra.mxu0 %v147
  %186 = vmatprep.subr.mxu0 0.0
  %187 = vmatpush1.msra.mxu0 %v146
  %188 = vmatprep.subr.mxu0 0.0
  %189 = vmatpush2.msra.mxu0 0.0
  %190 = vmatprep.subr.mxu0 0.0
  %191 = vmatpush2.msra.mxu0 0.0
  %192 = vmatprep.subr.mxu0 0.0
  %193 = vmatpush2.msra.mxu0 0.0
  %194 = vmatprep.subr.mxu0 0.0
  %195 = vmatpush2.msra.mxu0 0.0
  %196 = vmatprep.subr.mxu0 0.0
  %197 = vmatpush2.msra.mxu0 0.0
  %198 = vmatprep.subr.mxu0 0.0
  %199 = vmatpush2.msra.mxu0 0.0
  %200 = vmatprep.subr.mxu0 0.0
  %201 = vmatpush2.msra.mxu0 0.0
  %202 = vmatprep.subr.mxu0 0.0
  %203 = vmatpush2.msra.mxu0 0.0
  %204 = vmatprep.subr.mxu0 0.0
  %205 = vmatpush2.msra.mxu0 0.0
  %206 = vmatprep.subr.mxu0 0.0
  %207 = vmatpush2.msra.mxu0 0.0
  %208 = vmatprep.subr.mxu0 0.0
  %209 = vmatpush2.msra.mxu0 0.0
  %210 = vmatprep.subr.mxu0 0.0
  %211 = vmatpush2.msra.mxu0 0.0
  %212 = vmatprep.subr.mxu0 0.0
  %213 = vmatpush2.msra.mxu0 0.0
  %214 = vmatprep.subr.mxu0 0.0
  %215 = vmatpush2.msra.mxu0 0.0
  %216 = vmatprep.subr.mxu0 0.0
  %217 = vmatpush2.msra.mxu0 0.0
  %218 = vmatprep.subr.mxu0 0.0
  %219 = vmatpush2.msra.mxu0 0.0
  %220 = vmatprep.mubr.f32.mxu0 0.0
  %221 = vmatmul.mubr.f32.gmra.mxu0 %v154
  %v222 = vpop.f32.mrf.mxu0
  %v223 = vadd.f32 0.0, %v222
  %v224 = vpop.f32.mrf.mxu0
  %225 = vdwg.mxu0
  %v226 = vadd.f32 %v151, %v223
  %v227 = vxor.u32 %v226, 2147483648
  %v228 = vmul.f32 %v227, 1.442695
  %v229 = vpow.pop %v228
  %v230 = vadd.f32 %v229, 1.0
  %v231 = vrcp.pop %v230
  %v232 = vmul.f32 1.0, %v231
  %v234 = vlaneseq
  %v235 = vshrl.u32 %v234, 7
  %v236 = vsub.s32 0, %v235
  %v237 = vrot.slane %v150, %v236
  %238 = vrot.lane.b32.xlu0 %v237, 64
  %v239 = vpop.permute.xlu0 %238
  %v241 = vadd.f32 %v223, %v239
  %243 = vrot.lane.b32.xlu0 %v241, 64
  %v244 = vpop.permute.xlu0 %243
  %v246 = vmul.f32 %v232, %v244
  %248 = vrot.lane.b32.xlu0 %v246, 64
  %v249 = vpop.permute.xlu0 %248
  %v251 = vadd.f32 %v151, %v249
  %v252 = vtanh.pop %v251
  %v253 = vsub.f32 1.0, %v232
  %255 = vrot.lane.b32.xlu0 %v252, 96
  %v256 = vpop.permute.xlu0 %255
  %v258 = vmul.f32 %v253, %v256
  %v259 = vmul.f32 %v232, 0.0
  %v260 = vadd.f32 %v258, %v259
  %v261 = vld [vmem:[#allocation2 + $0x4] sm:$0xf]
  %263 = vrot.lane.b32.xlu0 %v260, 96
  %v264 = vpop.permute.xlu0 %263
  %v265 = vsel %vm152, %v264, 0
  %267 = vmatprep.subr.mxu0 0.0
  %268 = vmatpush1.msra.mxu0 0.0
  %269 = vmatprep.subr.mxu0 0.0
  %270 = vmatpush1.msra.mxu0 0.0
  %271 = vmatprep.subr.mxu0 0.0
  %272 = vmatpush1.msra.mxu0 0.0
  %273 = vmatprep.subr.mxu0 0.0
  %274 = vmatpush1.msra.mxu0 0.0
  %275 = vmatprep.subr.mxu0 0.0
  %276 = vmatpush1.msra.mxu0 0.0
  %277 = vmatprep.subr.mxu0 0.0
  %278 = vmatpush1.msra.mxu0 0.0
  %279 = vmatprep.subr.mxu0 0.0
  %280 = vmatpush1.msra.mxu0 0.0
  %281 = vmatprep.subr.mxu0 0.0
  %282 = vmatpush1.msra.mxu0 0.0
  %283 = vmatprep.subr.mxu0 0.0
  %284 = vmatpush1.msra.mxu0 0.0
  %285 = vmatprep.subr.mxu0 0.0
  %286 = vmatpush1.msra.mxu0 0.0
  %287 = vmatprep.subr.mxu0 0.0
  %288 = vmatpush1.msra.mxu0 0.0
  %289 = vmatprep.subr.mxu0 0.0
  %290 = vmatpush1.msra.mxu0 0.0
  %291 = vmatprep.subr.mxu0 0.0
  %292 = vmatpush1.msra.mxu0 %v149
  %293 = vmatprep.subr.mxu0 0.0
  %294 = vmatpush1.msra.mxu0 %v148
  %295 = vmatprep.subr.mxu0 0.0
  %296 = vmatpush1.msra.mxu0 %v147
  %297 = vmatprep.subr.mxu0 0.0
  %298 = vmatpush1.msra.mxu0 %v146
  %299 = vmatprep.subr.mxu0 0.0
  %300 = vmatpush2.msra.mxu0 0.0
  %301 = vmatprep.subr.mxu0 0.0
  %302 = vmatpush2.msra.mxu0 0.0
  %303 = vmatprep.subr.mxu0 0.0
  %304 = vmatpush2.msra.mxu0 0.0
  %305 = vmatprep.subr.mxu0 0.0
  %306 = vmatpush2.msra.mxu0 0.0
  %307 = vmatprep.subr.mxu0 0.0
  %308 = vmatpush2.msra.mxu0 0.0
  %309 = vmatprep.subr.mxu0 0.0
  %310 = vmatpush2.msra.mxu0 0.0
  %311 = vmatprep.subr.mxu0 0.0
  %312 = vmatpush2.msra.mxu0 0.0
  %313 = vmatprep.subr.mxu0 0.0
  %314 = vmatpush2.msra.mxu0 0.0
  %315 = vmatprep.subr.mxu0 0.0
  %316 = vmatpush2.msra.mxu0 0.0
  %317 = vmatprep.subr.mxu0 0.0
  %318 = vmatpush2.msra.mxu0 0.0
  %319 = vmatprep.subr.mxu0 0.0
  %320 = vmatpush2.msra.mxu0 0.0
  %321 = vmatprep.subr.mxu0 0.0
  %322 = vmatpush2.msra.mxu0 0.0
  %323 = vmatprep.subr.mxu0 0.0
  %324 = vmatpush2.msra.mxu0 0.0
  %325 = vmatprep.subr.mxu0 0.0
  %326 = vmatpush2.msra.mxu0 0.0
  %327 = vmatprep.subr.mxu0 0.0
  %328 = vmatpush2.msra.mxu0 0.0
  %329 = vmatprep.subr.mxu0 0.0
  %330 = vmatpush2.msra.mxu0 0.0
  %331 = vmatprep.mubr.f32.mxu0 0.0
  %332 = vmatmul.mubr.f32.gmra.mxu0 %v265
  %v333 = vpop.f32.mrf.mxu0
  %v334 = vadd.f32 0.0, %v333
  %v335 = vpop.f32.mrf.mxu0
  %336 = vdwg.mxu0
  %v337 = vadd.f32 %v261, %v334
  %v338 = vxor.u32 %v337, 2147483648
  %v339 = vmul.f32 %v338, 1.442695
  %v340 = vpow.pop %v339
  %v341 = vadd.f32 %v340, 1.0
  %v342 = vrcp.pop %v341
  %v343 = vmul.f32 1.0, %v342
  %v344 = vadd.f32 %v334, %v239
  %346 = vrot.lane.b32.xlu0 %v344, 64
  %v347 = vpop.permute.xlu0 %346
  %v349 = vmul.f32 %v343, %v347
  %351 = vrot.lane.b32.xlu0 %v349, 64
  %v352 = vpop.permute.xlu0 %351
  %v354 = vadd.f32 %v261, %v352
  %v355 = vtanh.pop %v354
  %v356 = vsub.f32 1.0, %v343
  %358 = vrot.lane.b32.xlu0 %v355, 96
  %v359 = vpop.permute.xlu0 %358
  %v361 = vmul.f32 %v356, %v359
  %v362 = vmul.f32 %v343, %v260
  %v363 = vadd.f32 %v361, %v362
  %v364 = vld [vmem:[#allocation2 + $0x8] sm:$0xf]
  %366 = vrot.lane.b32.xlu0 %v363, 96
  %v367 = vpop.permute.xlu0 %366
  %v368 = vsel %vm152, %v367, 0
  %370 = vmatprep.subr.mxu0 0.0
  %371 = vmatpush1.msra.mxu0 0.0
  %372 = vmatprep.subr.mxu0 0.0
  %373 = vmatpush1.msra.mxu0 0.0
  %374 = vmatprep.subr.mxu0 0.0
  %375 = vmatpush1.msra.mxu0 0.0
  %376 = vmatprep.subr.mxu0 0.0
  %377 = vmatpush1.msra.mxu0 0.0
  %378 = vmatprep.subr.mxu0 0.0
  %379 = vmatpush1.msra.mxu0 0.0
  %380 = vmatprep.subr.mxu0 0.0
  %381 = vmatpush1.msra.mxu0 0.0
  %382 = vmatprep.subr.mxu0 0.0
  %383 = vmatpush1.msra.mxu0 0.0
  %384 = vmatprep.subr.mxu0 0.0
  %385 = vmatpush1.msra.mxu0 0.0
  %386 = vmatprep.subr.mxu0 0.0
  %387 = vmatpush1.msra.mxu0 0.0
  %388 = vmatprep.subr.mxu0 0.0
  %389 = vmatpush1.msra.mxu0 0.0
  %390 = vmatprep.subr.mxu0 0.0
  %391 = vmatpush1.msra.mxu0 0.0
  %392 = vmatprep.subr.mxu0 0.0
  %393 = vmatpush1.msra.mxu0 0.0
  %394 = vmatprep.subr.mxu0 0.0
  %395 = vmatpush1.msra.mxu0 %v149
  %396 = vmatprep.subr.mxu0 0.0
  %397 = vmatpush1.msra.mxu0 %v148
  %398 = vmatprep.subr.mxu0 0.0
  %399 = vmatpush1.msra.mxu0 %v147
  %400 = vmatprep.subr.mxu0 0.0
  %401 = vmatpush1.msra.mxu0 %v146
  %402 = vmatprep.subr.mxu0 0.0
  %403 = vmatpush2.msra.mxu0 0.0
  %404 = vmatprep.subr.mxu0 0.0
  %405 = vmatpush2.msra.mxu0 0.0
  %406 = vmatprep.subr.mxu0 0.0
  %407 = vmatpush2.msra.mxu0 0.0
  %408 = vmatprep.subr.mxu0 0.0
  %409 = vmatpush2.msra.mxu0 0.0
  %410 = vmatprep.subr.mxu0 0.0
  %411 = vmatpush2.msra.mxu0 0.0
  %412 = vmatprep.subr.mxu0 0.0
  %413 = vmatpush2.msra.mxu0 0.0
  %414 = vmatprep.subr.mxu0 0.0
  %415 = vmatpush2.msra.mxu0 0.0
  %416 = vmatprep.subr.mxu0 0.0
  %417 = vmatpush2.msra.mxu0 0.0
  %418 = vmatprep.subr.mxu0 0.0
  %419 = vmatpush2.msra.mxu0 0.0
  %420 = vmatprep.subr.mxu0 0.0
  %421 = vmatpush2.msra.mxu0 0.0
  %422 = vmatprep.subr.mxu0 0.0
  %423 = vmatpush2.msra.mxu0 0.0
  %424 = vmatprep.subr.mxu0 0.0
  %425 = vmatpush2.msra.mxu0 0.0
  %426 = vmatprep.subr.mxu0 0.0
  %427 = vmatpush2.msra.mxu0 0.0
  %428 = vmatprep.subr.mxu0 0.0
  %429 = vmatpush2.msra.mxu0 0.0
  %430 = vmatprep.subr.mxu0 0.0
  %431 = vmatpush2.msra.mxu0 0.0
  %432 = vmatprep.subr.mxu0 0.0
  %433 = vmatpush2.msra.mxu0 0.0
  %434 = vmatprep.mubr.f32.mxu0 0.0
  %435 = vmatmul.mubr.f32.gmra.mxu0 %v368
  %v436 = vpop.f32.mrf.mxu0
  %v437 = vadd.f32 0.0, %v436
  %v438 = vpop.f32.mrf.mxu0
  %439 = vdwg.mxu0
  %v440 = vadd.f32 %v364, %v437
  %v441 = vxor.u32 %v440, 2147483648
  %v442 = vmul.f32 %v441, 1.442695
  %v443 = vpow.pop %v442
  %v444 = vadd.f32 %v443, 1.0
  %v445 = vrcp.pop %v444
  %v446 = vmul.f32 1.0, %v445
  %v447 = vadd.f32 %v437, %v239
  %449 = vrot.lane.b32.xlu0 %v447, 64
  %v450 = vpop.permute.xlu0 %449
  %v452 = vmul.f32 %v446, %v450
  %454 = vrot.lane.b32.xlu0 %v452, 64
  %v455 = vpop.permute.xlu0 %454
  %v457 = vadd.f32 %v364, %v455
  %v458 = vtanh.pop %v457
  %v459 = vsub.f32 1.0, %v446
  %461 = vrot.lane.b32.xlu0 %v458, 96
  %v462 = vpop.permute.xlu0 %461
  %v464 = vmul.f32 %v459, %v462
  %v465 = vmul.f32 %v446, %v363
  %v466 = vadd.f32 %v464, %v465
  %v467 = vld [vmem:[#allocation2 + $0xc] sm:$0xf]
  %469 = vrot.lane.b32.xlu0 %v466, 96
  %v470 = vpop.permute.xlu0 %469
  %v471 = vsel %vm152, %v470, 0
  %473 = vmatprep.subr.mxu0 0.0
  %474 = vmatpush1.msra.mxu0 0.0
  %475 = vmatprep.subr.mxu0 0.0
  %476 = vmatpush1.msra.mxu0 0.0
  %477 = vmatprep.subr.mxu0 0.0
  %478 = vmatpush1.msra.mxu0 0.0
  %479 = vmatprep.subr.mxu0 0.0
  %480 = vmatpush1.msra.mxu0 0.0
  %481 = vmatprep.subr.mxu0 0.0
  %482 = vmatpush1.msra.mxu0 0.0
  %483 = vmatprep.subr.mxu0 0.0
  %484 = vmatpush1.msra.mxu0 0.0
  %485 = vmatprep.subr.mxu0 0.0
  %486 = vmatpush1.msra.mxu0 0.0
  %487 = vmatprep.subr.mxu0 0.0
  %488 = vmatpush1.msra.mxu0 0.0
  %489 = vmatprep.subr.mxu0 0.0
  %490 = vmatpush1.msra.mxu0 0.0
  %491 = vmatprep.subr.mxu0 0.0
  %492 = vmatpush1.msra.mxu0 0.0
  %493 = vmatprep.subr.mxu0 0.0
  %494 = vmatpush1.msra.mxu0 0.0
  %495 = vmatprep.subr.mxu0 0.0
  %496 = vmatpush1.msra.mxu0 0.0
  %497 = vmatprep.subr.mxu0 0.0
  %498 = vmatpush1.msra.mxu0 %v149
  %499 = vmatprep.subr.mxu0 0.0
  %500 = vmatpush1.msra.mxu0 %v148
  %501 = vmatprep.subr.mxu0 0.0
  %502 = vmatpush1.msra.mxu0 %v147
  %503 = vmatprep.subr.mxu0 0.0
  %504 = vmatpush1.msra.mxu0 %v146
  %505 = vmatprep.subr.mxu0 0.0
  %506 = vmatpush2.msra.mxu0 0.0
  %507 = vmatprep.subr.mxu0 0.0
  %508 = vmatpush2.msra.mxu0 0.0
  %509 = vmatprep.subr.mxu0 0.0
  %510 = vmatpush2.msra.mxu0 0.0
  %511 = vmatprep.subr.mxu0 0.0
  %512 = vmatpush2.msra.mxu0 0.0
  %513 = vmatprep.subr.mxu0 0.0
  %514 = vmatpush2.msra.mxu0 0.0
  %515 = vmatprep.subr.mxu0 0.0
  %516 = vmatpush2.msra.mxu0 0.0
  %517 = vmatprep.subr.mxu0 0.0
  %518 = vmatpush2.msra.mxu0 0.0
  %519 = vmatprep.subr.mxu0 0.0
  %520 = vmatpush2.msra.mxu0 0.0
  %521 = vmatprep.subr.mxu0 0.0
  %522 = vmatpush2.msra.mxu0 0.0
  %523 = vmatprep.subr.mxu0 0.0
  %524 = vmatpush2.msra.mxu0 0.0
  %525 = vmatprep.subr.mxu0 0.0
  %526 = vmatpush2.msra.mxu0 0.0
  %527 = vmatprep.subr.mxu0 0.0
  %528 = vmatpush2.msra.mxu0 0.0
  %529 = vmatprep.subr.mxu0 0.0
  %530 = vmatpush2.msra.mxu0 0.0
  %531 = vmatprep.subr.mxu0 0.0
  %532 = vmatpush2.msra.mxu0 0.0
  %533 = vmatprep.subr.mxu0 0.0
  %534 = vmatpush2.msra.mxu0 0.0
  %535 = vmatprep.subr.mxu0 0.0
  %536 = vmatpush2.msra.mxu0 0.0
  %537 = vmatprep.mubr.f32.mxu0 0.0
  %538 = vmatmul.mubr.f32.gmra.mxu0 %v471
  %v539 = vpop.f32.mrf.mxu0
  %v540 = vadd.f32 0.0, %v539
  %v541 = vpop.f32.mrf.mxu0
  %542 = vdwg.mxu0
  %v543 = vadd.f32 %v467, %v540
  %v544 = vxor.u32 %v543, 2147483648
  %v545 = vmul.f32 %v544, 1.442695
  %v546 = vpow.pop %v545
  %v547 = vadd.f32 %v546, 1.0
  %v548 = vrcp.pop %v547
  %v549 = vmul.f32 1.0, %v548
  %v550 = vadd.f32 %v540, %v239
  %552 = vrot.lane.b32.xlu0 %v550, 64
  %v553 = vpop.permute.xlu0 %552
  %v555 = vmul.f32 %v549, %v553
  %557 = vrot.lane.b32.xlu0 %v555, 64
  %v558 = vpop.permute.xlu0 %557
  %v560 = vadd.f32 %v467, %v558
  %v561 = vtanh.pop %v560
  %v562 = vsub.f32 1.0, %v549
  %564 = vrot.lane.b32.xlu0 %v561, 96
  %v565 = vpop.permute.xlu0 %564
  %v567 = vmul.f32 %v562, %v565
  %v568 = vmul.f32 %v549, %v466
  %v569 = vadd.f32 %v567, %v568
  %v570 = vld [vmem:[#allocation2 + $0x10] sm:$0xf]
  %572 = vrot.lane.b32.xlu0 %v569, 96
  %v573 = vpop.permute.xlu0 %572
  %v574 = vsel %vm152, %v573, 0
  %576 = vmatprep.subr.mxu0 0.0
  %577 = vmatpush1.msra.mxu0 0.0
  %578 = vmatprep.subr.mxu0 0.0
  %579 = vmatpush1.msra.mxu0 0.0
  %580 = vmatprep.subr.mxu0 0.0
  %581 = vmatpush1.msra.mxu0 0.0
  %582 = vmatprep.subr.mxu0 0.0
  %583 = vmatpush1.msra.mxu0 0.0
  %584 = vmatprep.subr.mxu0 0.0
  %585 = vmatpush1.msra.mxu0 0.0
  %586 = vmatprep.subr.mxu0 0.0
  %587 = vmatpush1.msra.mxu0 0.0
  %588 = vmatprep.subr.mxu0 0.0
  %589 = vmatpush1.msra.mxu0 0.0
  %590 = vmatprep.subr.mxu0 0.0
  %591 = vmatpush1.msra.mxu0 0.0
  %592 = vmatprep.subr.mxu0 0.0
  %593 = vmatpush1.msra.mxu0 0.0
  %594 = vmatprep.subr.mxu0 0.0
  %595 = vmatpush1.msra.mxu0 0.0
  %596 = vmatprep.subr.mxu0 0.0
  %597 = vmatpush1.msra.mxu0 0.0
  %598 = vmatprep.subr.mxu0 0.0
  %599 = vmatpush1.msra.mxu0 0.0
  %600 = vmatprep.subr.mxu0 0.0
  %601 = vmatpush1.msra.mxu0 %v149
  %602 = vmatprep.subr.mxu0 0.0
  %603 = vmatpush1.msra.mxu0 %v148
  %604 = vmatprep.subr.mxu0 0.0
  %605 = vmatpush1.msra.mxu0 %v147
  %606 = vmatprep.subr.mxu0 0.0
  %607 = vmatpush1.msra.mxu0 %v146
  %608 = vmatprep.subr.mxu0 0.0
  %609 = vmatpush2.msra.mxu0 0.0
  %610 = vmatprep.subr.mxu0 0.0
  %611 = vmatpush2.msra.mxu0 0.0
  %612 = vmatprep.subr.mxu0 0.0
  %613 = vmatpush2.msra.mxu0 0.0
  %614 = vmatprep.subr.mxu0 0.0
  %615 = vmatpush2.msra.mxu0 0.0
  %616 = vmatprep.subr.mxu0 0.0
  %617 = vmatpush2.msra.mxu0 0.0
  %618 = vmatprep.subr.mxu0 0.0
  %619 = vmatpush2.msra.mxu0 0.0
  %620 = vmatprep.subr.mxu0 0.0
  %621 = vmatpush2.msra.mxu0 0.0
  %622 = vmatprep.subr.mxu0 0.0
  %623 = vmatpush2.msra.mxu0 0.0
  %624 = vmatprep.subr.mxu0 0.0
  %625 = vmatpush2.msra.mxu0 0.0
  %626 = vmatprep.subr.mxu0 0.0
  %627 = vmatpush2.msra.mxu0 0.0
  %628 = vmatprep.subr.mxu0 0.0
  %629 = vmatpush2.msra.mxu0 0.0
  %630 = vmatprep.subr.mxu0 0.0
  %631 = vmatpush2.msra.mxu0 0.0
  %632 = vmatprep.subr.mxu0 0.0
  %633 = vmatpush2.msra.mxu0 0.0
  %634 = vmatprep.subr.mxu0 0.0
  %635 = vmatpush2.msra.mxu0 0.0
  %636 = vmatprep.subr.mxu0 0.0
  %637 = vmatpush2.msra.mxu0 0.0
  %638 = vmatprep.subr.mxu0 0.0
  %639 = vmatpush2.msra.mxu0 0.0
  %640 = vmatprep.mubr.f32.mxu0 0.0
  %641 = vmatmul.mubr.f32.gmra.mxu0 %v574
  %v642 = vpop.f32.mrf.mxu0
  %v643 = vadd.f32 0.0, %v642
  %v644 = vpop.f32.mrf.mxu0
  %645 = vdwg.mxu0
  %v646 = vadd.f32 %v570, %v643
  %v647 = vxor.u32 %v646, 2147483648
  %v648 = vmul.f32 %v647, 1.442695
  %v649 = vpow.pop %v648
  %v650 = vadd.f32 %v649, 1.0
  %v651 = vrcp.pop %v650
  %v652 = vmul.f32 1.0, %v651
  %v653 = vadd.f32 %v643, %v239
  %655 = vrot.lane.b32.xlu0 %v653, 64
  %v656 = vpop.permute.xlu0 %655
  %v658 = vmul.f32 %v652, %v656
  %660 = vrot.lane.b32.xlu0 %v658, 64
  %v661 = vpop.permute.xlu0 %660
  %v663 = vadd.f32 %v570, %v661
  %v664 = vtanh.pop %v663
  %v665 = vsub.f32 1.0, %v652
  %667 = vrot.lane.b32.xlu0 %v664, 96
  %v668 = vpop.permute.xlu0 %667
  %v670 = vmul.f32 %v665, %v668
  %v671 = vmul.f32 %v652, %v569
  %v672 = vadd.f32 %v670, %v671
  %v673 = vld [vmem:[#allocation2 + $0x14] sm:$0xf]
  %675 = vrot.lane.b32.xlu0 %v672, 96
  %v676 = vpop.permute.xlu0 %675
  %v677 = vsel %vm152, %v676, 0
  %679 = vmatprep.subr.mxu0 0.0
  %680 = vmatpush1.msra.mxu0 0.0
  %681 = vmatprep.subr.mxu0 0.0
  %682 = vmatpush1.msra.mxu0 0.0
  %683 = vmatprep.subr.mxu0 0.0
  %684 = vmatpush1.msra.mxu0 0.0
  %685 = vmatprep.subr.mxu0 0.0
  %686 = vmatpush1.msra.mxu0 0.0
  %687 = vmatprep.subr.mxu0 0.0
  %688 = vmatpush1.msra.mxu0 0.0
  %689 = vmatprep.subr.mxu0 0.0
  %690 = vmatpush1.msra.mxu0 0.0
  %691 = vmatprep.subr.mxu0 0.0
  %692 = vmatpush1.msra.mxu0 0.0
  %693 = vmatprep.subr.mxu0 0.0
  %694 = vmatpush1.msra.mxu0 0.0
  %695 = vmatprep.subr.mxu0 0.0
  %696 = vmatpush1.msra.mxu0 0.0
  %697 = vmatprep.subr.mxu0 0.0
  %698 = vmatpush1.msra.mxu0 0.0
  %699 = vmatprep.subr.mxu0 0.0
  %700 = vmatpush1.msra.mxu0 0.0
  %701 = vmatprep.subr.mxu0 0.0
  %702 = vmatpush1.msra.mxu0 0.0
  %703 = vmatprep.subr.mxu0 0.0
  %704 = vmatpush1.msra.mxu0 %v149
  %705 = vmatprep.subr.mxu0 0.0
  %706 = vmatpush1.msra.mxu0 %v148
  %707 = vmatprep.subr.mxu0 0.0
  %708 = vmatpush1.msra.mxu0 %v147
  %709 = vmatprep.subr.mxu0 0.0
  %710 = vmatpush1.msra.mxu0 %v146
  %711 = vmatprep.subr.mxu0 0.0
  %712 = vmatpush2.msra.mxu0 0.0
  %713 = vmatprep.subr.mxu0 0.0
  %714 = vmatpush2.msra.mxu0 0.0
  %715 = vmatprep.subr.mxu0 0.0
  %716 = vmatpush2.msra.mxu0 0.0
  %717 = vmatprep.subr.mxu0 0.0
  %718 = vmatpush2.msra.mxu0 0.0
  %719 = vmatprep.subr.mxu0 0.0
  %720 = vmatpush2.msra.mxu0 0.0
  %721 = vmatprep.subr.mxu0 0.0
  %722 = vmatpush2.msra.mxu0 0.0
  %723 = vmatprep.subr.mxu0 0.0
  %724 = vmatpush2.msra.mxu0 0.0
  %725 = vmatprep.subr.mxu0 0.0
  %726 = vmatpush2.msra.mxu0 0.0
  %727 = vmatprep.subr.mxu0 0.0
  %728 = vmatpush2.msra.mxu0 0.0
  %729 = vmatprep.subr.mxu0 0.0
  %730 = vmatpush2.msra.mxu0 0.0
  %731 = vmatprep.subr.mxu0 0.0
  %732 = vmatpush2.msra.mxu0 0.0
  %733 = vmatprep.subr.mxu0 0.0
  %734 = vmatpush2.msra.mxu0 0.0
  %735 = vmatprep.subr.mxu0 0.0
  %736 = vmatpush2.msra.mxu0 0.0
  %737 = vmatprep.subr.mxu0 0.0
  %738 = vmatpush2.msra.mxu0 0.0
  %739 = vmatprep.subr.mxu0 0.0
  %740 = vmatpush2.msra.mxu0 0.0
  %741 = vmatprep.subr.mxu0 0.0
  %742 = vmatpush2.msra.mxu0 0.0
  %743 = vmatprep.mubr.f32.mxu0 0.0
  %744 = vmatmul.mubr.f32.gmra.mxu0 %v677
  %v745 = vpop.f32.mrf.mxu0
  %v746 = vadd.f32 0.0, %v745
  %v747 = vpop.f32.mrf.mxu0
  %748 = vdwg.mxu0
  %v749 = vadd.f32 %v673, %v746
  %v750 = vxor.u32 %v749, 2147483648
  %v751 = vmul.f32 %v750, 1.442695
  %v752 = vpow.pop %v751
  %v753 = vadd.f32 %v752, 1.0
  %v754 = vrcp.pop %v753
  %v755 = vmul.f32 1.0, %v754
  %v756 = vadd.f32 %v746, %v239
  %758 = vrot.lane.b32.xlu0 %v756, 64
  %v759 = vpop.permute.xlu0 %758
  %v761 = vmul.f32 %v755, %v759
  %763 = vrot.lane.b32.xlu0 %v761, 64
  %v764 = vpop.permute.xlu0 %763
  %v766 = vadd.f32 %v673, %v764
  %v767 = vtanh.pop %v766
  %v768 = vsub.f32 1.0, %v755
  %770 = vrot.lane.b32.xlu0 %v767, 96
  %v771 = vpop.permute.xlu0 %770
  %v773 = vmul.f32 %v768, %v771
  %v774 = vmul.f32 %v755, %v672
  %v775 = vadd.f32 %v773, %v774
  %v776 = vld [vmem:[#allocation2 + $0x18] sm:$0xf]
  %778 = vrot.lane.b32.xlu0 %v775, 96
  %v779 = vpop.permute.xlu0 %778
  %v780 = vsel %vm152, %v779, 0
  %782 = vmatprep.subr.mxu0 0.0
  %783 = vmatpush1.msra.mxu0 0.0
  %784 = vmatprep.subr.mxu0 0.0
  %785 = vmatpush1.msra.mxu0 0.0
  %786 = vmatprep.subr.mxu0 0.0
  %787 = vmatpush1.msra.mxu0 0.0
  %788 = vmatprep.subr.mxu0 0.0
  %789 = vmatpush1.msra.mxu0 0.0
  %790 = vmatprep.subr.mxu0 0.0
  %791 = vmatpush1.msra.mxu0 0.0
  %792 = vmatprep.subr.mxu0 0.0
  %793 = vmatpush1.msra.mxu0 0.0
  %794 = vmatprep.subr.mxu0 0.0
  %795 = vmatpush1.msra.mxu0 0.0
  %796 = vmatprep.subr.mxu0 0.0
  %797 = vmatpush1.msra.mxu0 0.0
  %798 = vmatprep.subr.mxu0 0.0
  %799 = vmatpush1.msra.mxu0 0.0
  %800 = vmatprep.subr.mxu0 0.0
  %801 = vmatpush1.msra.mxu0 0.0
  %802 = vmatprep.subr.mxu0 0.0
  %803 = vmatpush1.msra.mxu0 0.0
  %804 = vmatprep.subr.mxu0 0.0
  %805 = vmatpush1.msra.mxu0 0.0
  %806 = vmatprep.subr.mxu0 0.0
  %807 = vmatpush1.msra.mxu0 %v149
  %808 = vmatprep.subr.mxu0 0.0
  %809 = vmatpush1.msra.mxu0 %v148
  %810 = vmatprep.subr.mxu0 0.0
  %811 = vmatpush1.msra.mxu0 %v147
  %812 = vmatprep.subr.mxu0 0.0
  %813 = vmatpush1.msra.mxu0 %v146
  %814 = vmatprep.subr.mxu0 0.0
  %815 = vmatpush2.msra.mxu0 0.0
  %816 = vmatprep.subr.mxu0 0.0
  %817 = vmatpush2.msra.mxu0 0.0
  %818 = vmatprep.subr.mxu0 0.0
  %819 = vmatpush2.msra.mxu0 0.0
  %820 = vmatprep.subr.mxu0 0.0
  %821 = vmatpush2.msra.mxu0 0.0
  %822 = vmatprep.subr.mxu0 0.0
  %823 = vmatpush2.msra.mxu0 0.0
  %824 = vmatprep.subr.mxu0 0.0
  %825 = vmatpush2.msra.mxu0 0.0
  %826 = vmatprep.subr.mxu0 0.0
  %827 = vmatpush2.msra.mxu0 0.0
  %828 = vmatprep.subr.mxu0 0.0
  %829 = vmatpush2.msra.mxu0 0.0
  %830 = vmatprep.subr.mxu0 0.0
  %831 = vmatpush2.msra.mxu0 0.0
  %832 = vmatprep.subr.mxu0 0.0
  %833 = vmatpush2.msra.mxu0 0.0
  %834 = vmatprep.subr.mxu0 0.0
  %835 = vmatpush2.msra.mxu0 0.0
  %836 = vmatprep.subr.mxu0 0.0
  %837 = vmatpush2.msra.mxu0 0.0
  %838 = vmatprep.subr.mxu0 0.0
  %839 = vmatpush2.msra.mxu0 0.0
  %840 = vmatprep.subr.mxu0 0.0
  %841 = vmatpush2.msra.mxu0 0.0
  %842 = vmatprep.subr.mxu0 0.0
  %843 = vmatpush2.msra.mxu0 0.0
  %844 = vmatprep.subr.mxu0 0.0
  %845 = vmatpush2.msra.mxu0 0.0
  %846 = vmatprep.mubr.f32.mxu0 0.0
  %847 = vmatmul.mubr.f32.gmra.mxu0 %v780
  %v848 = vpop.f32.mrf.mxu0
  %v849 = vadd.f32 0.0, %v848
  %v850 = vpop.f32.mrf.mxu0
  %851 = vdwg.mxu0
  %v852 = vadd.f32 %v776, %v849
  %v853 = vxor.u32 %v852, 2147483648
  %v854 = vmul.f32 %v853, 1.442695
  %v855 = vpow.pop %v854
  %v856 = vadd.f32 %v855, 1.0
  %v857 = vrcp.pop %v856
  %v858 = vmul.f32 1.0, %v857
  %v859 = vadd.f32 %v849, %v239
  %861 = vrot.lane.b32.xlu0 %v859, 64
  %v862 = vpop.permute.xlu0 %861
  %v864 = vmul.f32 %v858, %v862
  %866 = vrot.lane.b32.xlu0 %v864, 64
  %v867 = vpop.permute.xlu0 %866
  %v869 = vadd.f32 %v776, %v867
  %v870 = vtanh.pop %v869
  %v871 = vsub.f32 1.0, %v858
  %873 = vrot.lane.b32.xlu0 %v870, 96
  %v874 = vpop.permute.xlu0 %873
  %v876 = vmul.f32 %v871, %v874
  %v877 = vmul.f32 %v858, %v775
  %v878 = vadd.f32 %v876, %v877
  %v879 = vld [vmem:[#allocation2 + $0x1c] sm:$0xf]
  %881 = vrot.lane.b32.xlu0 %v878, 96
  %v882 = vpop.permute.xlu0 %881
  %v883 = vsel %vm152, %v882, 0
  %885 = vmatprep.subr.mxu0 0.0
  %886 = vmatpush1.msra.mxu0 0.0
  %887 = vmatprep.subr.mxu0 0.0
  %888 = vmatpush1.msra.mxu0 0.0
  %889 = vmatprep.subr.mxu0 0.0
  %890 = vmatpush1.msra.mxu0 0.0
  %891 = vmatprep.subr.mxu0 0.0
  %892 = vmatpush1.msra.mxu0 0.0
  %893 = vmatprep.subr.mxu0 0.0
  %894 = vmatpush1.msra.mxu0 0.0
  %895 = vmatprep.subr.mxu0 0.0
  %896 = vmatpush1.msra.mxu0 0.0
  %897 = vmatprep.subr.mxu0 0.0
  %898 = vmatpush1.msra.mxu0 0.0
  %899 = vmatprep.subr.mxu0 0.0
  %900 = vmatpush1.msra.mxu0 0.0
  %901 = vmatprep.subr.mxu0 0.0
  %902 = vmatpush1.msra.mxu0 0.0
  %903 = vmatprep.subr.mxu0 0.0
  %904 = vmatpush1.msra.mxu0 0.0
  %905 = vmatprep.subr.mxu0 0.0
  %906 = vmatpush1.msra.mxu0 0.0
  %907 = vmatprep.subr.mxu0 0.0
  %908 = vmatpush1.msra.mxu0 0.0
  %909 = vmatprep.subr.mxu0 0.0
  %910 = vmatpush1.msra.mxu0 %v149
  %911 = vmatprep.subr.mxu0 0.0
  %912 = vmatpush1.msra.mxu0 %v148
  %913 = vmatprep.subr.mxu0 0.0
  %914 = vmatpush1.msra.mxu0 %v147
  %915 = vmatprep.subr.mxu0 0.0
  %916 = vmatpush1.msra.mxu0 %v146
  %917 = vmatprep.subr.mxu0 0.0
  %918 = vmatpush2.msra.mxu0 0.0
  %919 = vmatprep.subr.mxu0 0.0
  %920 = vmatpush2.msra.mxu0 0.0
  %921 = vmatprep.subr.mxu0 0.0
  %922 = vmatpush2.msra.mxu0 0.0
  %923 = vmatprep.subr.mxu0 0.0
  %924 = vmatpush2.msra.mxu0 0.0
  %925 = vmatprep.subr.mxu0 0.0
  %926 = vmatpush2.msra.mxu0 0.0
  %927 = vmatprep.subr.mxu0 0.0
  %928 = vmatpush2.msra.mxu0 0.0
  %929 = vmatprep.subr.mxu0 0.0
  %930 = vmatpush2.msra.mxu0 0.0
  %931 = vmatprep.subr.mxu0 0.0
  %932 = vmatpush2.msra.mxu0 0.0
  %933 = vmatprep.subr.mxu0 0.0
  %934 = vmatpush2.msra.mxu0 0.0
  %935 = vmatprep.subr.mxu0 0.0
  %936 = vmatpush2.msra.mxu0 0.0
  %937 = vmatprep.subr.mxu0 0.0
  %938 = vmatpush2.msra.mxu0 0.0
  %939 = vmatprep.subr.mxu0 0.0
  %940 = vmatpush2.msra.mxu0 0.0
  %941 = vmatprep.subr.mxu0 0.0
  %942 = vmatpush2.msra.mxu0 0.0
  %943 = vmatprep.subr.mxu0 0.0
  %944 = vmatpush2.msra.mxu0 0.0
  %945 = vmatprep.subr.mxu0 0.0
  %946 = vmatpush2.msra.mxu0 0.0
  %947 = vmatprep.subr.mxu0 0.0
  %948 = vmatpush2.msra.mxu0 0.0
  %949 = vmatprep.mubr.f32.mxu0 0.0
  %950 = vmatmul.mubr.f32.gmra.mxu0 %v883
  %v951 = vpop.f32.mrf.mxu0
  %v952 = vadd.f32 0.0, %v951
  %v953 = vpop.f32.mrf.mxu0
  %954 = vdwg.mxu0
  %v955 = vadd.f32 %v879, %v952
  %v956 = vxor.u32 %v955, 2147483648
  %v957 = vmul.f32 %v956, 1.442695
  %v958 = vpow.pop %v957
  %v959 = vadd.f32 %v958, 1.0
  %v960 = vrcp.pop %v959
  %v961 = vmul.f32 1.0, %v960
  %v962 = vadd.f32 %v952, %v239
  %964 = vrot.lane.b32.xlu0 %v962, 64
  %v965 = vpop.permute.xlu0 %964
  %v967 = vmul.f32 %v961, %v965
  %969 = vrot.lane.b32.xlu0 %v967, 64
  %v970 = vpop.permute.xlu0 %969
  %v972 = vadd.f32 %v879, %v970
  %v973 = vtanh.pop %v972
  %v974 = vsub.f32 1.0, %v961
  %976 = vrot.lane.b32.xlu0 %v973, 96
  %v977 = vpop.permute.xlu0 %976
  %v979 = vmul.f32 %v974, %v977
  %v980 = vmul.f32 %v961, %v878
  %v981 = vadd.f32 %v979, %v980
  %v982 = vrot.slane %v363, 4
  %v984 = vrot.slane %v569, 4
  %v986 = vrot.slane %v775, 4
  %v989 = vrot.slane %v981, 4
  %vm991 = vcmask 1043456
  %v992 = vsel %vm991, %v260, %v982
  %v993 = vsel %vm991, %v466, %v984
  %v994 = vsel %vm991, %v672, %v986
  %v995 = vsel %vm991, %v878, %v989
  %v996 = vld [vmem:[%s6] sm:$0xff]
  %v997 = vld [vmem:[%s6 + $0x8] sm:$0xff]
  %v998 = vld [vmem:[%s6 + $0x10] sm:$0xff]
  %v999 = vld [vmem:[%s6 + $0x18] sm:$0xff]
  %v1000 = vld [vmem:[%s7] sm:$0x1]
  %v1002 = vlaneseq
  %v1003 = vshrl.u32 %v1002, 7
  %v1004 = vsub.s32 0, %v1003
  %v1005 = vrot.slane %v1000, %v1004
  %1011 = vrot.lane.b32.xlu0 %v992, 96
  %v1012 = vpop.permute.xlu0 %1011
  %1013 = vrot.lane.b32.xlu0 %v993, 96
  %v1014 = vpop.permute.xlu0 %1013
  %1015 = vrot.lane.b32.xlu0 %v994, 96
  %v1016 = vpop.permute.xlu0 %1015
  %1017 = vrot.lane.b32.xlu0 %v995, 96
  %v1018 = vpop.permute.xlu0 %1017
  %v1019 = vsel %vm152, %v1012, 0
  %v1021 = vsel %vm152, %v1014, 0
  %v1023 = vsel %vm152, %v1016, 0
  %v1025 = vsel %vm152, %v1018, 0
  %1027 = vmatprep.subr.mxu0 0.0
  %1028 = vmatpush1.msra.mxu0 0.0
  %1029 = vmatprep.subr.mxu0 0.0
  %1030 = vmatpush1.msra.mxu0 0.0
  %1031 = vmatprep.subr.mxu0 0.0
  %1032 = vmatpush1.msra.mxu0 0.0
  %1033 = vmatprep.subr.mxu0 0.0
  %1034 = vmatpush1.msra.mxu0 0.0
  %1035 = vmatprep.subr.mxu0 0.0
  %1036 = vmatpush1.msra.mxu0 0.0
  %1037 = vmatprep.subr.mxu0 0.0
  %1038 = vmatpush1.msra.mxu0 0.0
  %1039 = vmatprep.subr.mxu0 0.0
  %1040 = vmatpush1.msra.mxu0 0.0
  %1041 = vmatprep.subr.mxu0 0.0
  %1042 = vmatpush1.msra.mxu0 0.0
  %1043 = vmatprep.subr.mxu0 0.0
  %1044 = vmatpush1.msra.mxu0 0.0
  %1045 = vmatprep.subr.mxu0 0.0
  %1046 = vmatpush1.msra.mxu0 0.0
  %1047 = vmatprep.subr.mxu0 0.0
  %1048 = vmatpush1.msra.mxu0 0.0
  %1049 = vmatprep.subr.mxu0 0.0
  %1050 = vmatpush1.msra.mxu0 0.0
  %1051 = vmatprep.subr.mxu0 0.0
  %1052 = vmatpush1.msra.mxu0 %v999
  %1053 = vmatprep.subr.mxu0 0.0
  %1054 = vmatpush1.msra.mxu0 %v998
  %1055 = vmatprep.subr.mxu0 0.0
  %1056 = vmatpush1.msra.mxu0 %v997
  %1057 = vmatprep.subr.mxu0 0.0
  %1058 = vmatpush1.msra.mxu0 %v996
  %1059 = vmatprep.subr.mxu0 0.0
  %1060 = vmatpush2.msra.mxu0 0.0
  %1061 = vmatprep.subr.mxu0 0.0
  %1062 = vmatpush2.msra.mxu0 0.0
  %1063 = vmatprep.subr.mxu0 0.0
  %1064 = vmatpush2.msra.mxu0 0.0
  %1065 = vmatprep.subr.mxu0 0.0
  %1066 = vmatpush2.msra.mxu0 0.0
  %1067 = vmatprep.subr.mxu0 0.0
  %1068 = vmatpush2.msra.mxu0 0.0
  %1069 = vmatprep.subr.mxu0 0.0
  %1070 = vmatpush2.msra.mxu0 0.0
  %1071 = vmatprep.subr.mxu0 0.0
  %1072 = vmatpush2.msra.mxu0 0.0
  %1073 = vmatprep.subr.mxu0 0.0
  %1074 = vmatpush2.msra.mxu0 0.0
  %1075 = vmatprep.subr.mxu0 0.0
  %1076 = vmatpush2.msra.mxu0 0.0
  %1077 = vmatprep.subr.mxu0 0.0
  %1078 = vmatpush2.msra.mxu0 0.0
  %1079 = vmatprep.subr.mxu0 0.0
  %1080 = vmatpush2.msra.mxu0 0.0
  %1081 = vmatprep.subr.mxu0 0.0
  %1082 = vmatpush2.msra.mxu0 0.0
  %1083 = vmatprep.subr.mxu0 0.0
  %1084 = vmatpush2.msra.mxu0 0.0
  %1085 = vmatprep.subr.mxu0 0.0
  %1086 = vmatpush2.msra.mxu0 0.0
  %1087 = vmatprep.subr.mxu0 0.0
  %1088 = vmatpush2.msra.mxu0 0.0
  %1089 = vmatprep.subr.mxu0 0.0
  %1090 = vmatpush2.msra.mxu0 0.0
  %1091 = vmatprep.mubr.f32.mxu0 0.0
  %1092 = vmatmul.mubr.f32.gmra.mxu0 %v1019
  %v1093 = vpop.f32.mrf.mxu0
  %v1094 = vadd.f32 %v1005, %v1093
  %v1095 = vpop.f32.mrf.mxu0
  %1096 = vmatprep.mubr.f32.mxu0 0.0
  %1097 = vmatmul.mubr.f32.gmra.mxu0 %v1021
  %v1098 = vpop.f32.mrf.mxu0
  %v1099 = vadd.f32 %v1005, %v1098
  %v1100 = vpop.f32.mrf.mxu0
  %1101 = vmatprep.mubr.f32.mxu0 0.0
  %1102 = vmatmul.mubr.f32.gmra.mxu0 %v1023
  %v1103 = vpop.f32.mrf.mxu0
  %v1104 = vadd.f32 %v1005, %v1103
  %v1105 = vpop.f32.mrf.mxu0
  %1106 = vmatprep.mubr.f32.mxu0 0.0
  %1107 = vmatmul.mubr.f32.gmra.mxu0 %v1025
  %v1108 = vpop.f32.mrf.mxu0
  %v1109 = vadd.f32 %v1005, %v1108
  %v1110 = vpop.f32.mrf.mxu0
  %1111 = vdwg.mxu0
  %vm1112 = vcmask 64512
  %v1113 = vsel %vm1112, %v1094, -inf
  %1114 = vmax.xlane.f32.xlu0 %v1113
  %v1115 = vpop.xlane.xlu0 %1114
  %v1116 = vsel %vm1112, %v1099, -inf
  %1117 = vmax.xlane.f32.xlu0 %v1116
  %v1118 = vpop.xlane.xlu0 %1117
  %v1119 = vsel %vm1112, %v1104, -inf
  %1120 = vmax.xlane.f32.xlu0 %v1119
  %v1121 = vpop.xlane.xlu0 %1120
  %v1122 = vsel %vm1112, %v1109, -inf
  %1123 = vmax.xlane.f32.xlu0 %v1122
  %v1124 = vpop.xlane.xlu0 %1123
  %v1125 = vsub.f32 %v1094, %v1115
  %v1126 = vsub.f32 %v1099, %v1118
  %v1127 = vsub.f32 %v1104, %v1121
  %v1128 = vsub.f32 %v1109, %v1124
  %v1129 = vmul.f32 %v1125, 1.442695
  %v1130 = vpow.pop %v1129
  %v1131 = vmul.f32 %v1126, 1.442695
  %v1132 = vpow.pop %v1131
  %v1133 = vmul.f32 %v1127, 1.442695
  %v1134 = vpow.pop %v1133
  %v1135 = vmul.f32 %v1128, 1.442695
  %v1136 = vpow.pop %v1135
  %v1137 = vsel %vm1112, %v1130, 0.0
  %1138 = vadd.xlane.f32.xlu0 %v1137
  %v1139 = vpop.xlane.xlu0 %1138
  %v1140 = vsel %vm1112, %v1132, 0.0
  %1141 = vadd.xlane.f32.xlu0 %v1140
  %v1142 = vpop.xlane.xlu0 %1141
  %v1143 = vsel %vm1112, %v1134, 0.0
  %1144 = vadd.xlane.f32.xlu0 %v1143
  %v1145 = vpop.xlane.xlu0 %1144
  %v1146 = vsel %vm1112, %v1136, 0.0
  %1147 = vadd.xlane.f32.xlu0 %v1146
  %v1148 = vpop.xlane.xlu0 %1147
  %v1149 = vrcp.pop %v1139
  %v1150 = vmul.f32 %v1130, %v1149
  %v1151 = vrcp.pop %v1142
  %v1152 = vmul.f32 %v1132, %v1151
  %v1153 = vrcp.pop %v1145
  %v1154 = vmul.f32 %v1134, %v1153
  %v1155 = vrcp.pop %v1148
  %v1156 = vmul.f32 %v1136, %v1155
  %s1157 = sld [smem:[#allocation3]]
  %s1158 = ssub.f32 1.0, %s1157
  %v1159 = vstv %s1158
  %v1160 = vmul.f32 %v1159, %v1150
  %v1161 = vmul.f32 %v1159, %v1152
  %v1162 = vmul.f32 %v1159, %v1154
  %v1163 = vmul.f32 %v1159, %v1156
  %v1164 = vrcp.pop 8.0
  %s1165 = vtos %v1164
  %s1166 = smul.f32 %s1157, %s1165
  %v1167 = vstv %s1166
  %v1168 = vadd.f32 %v1160, %v1167
  %v1169 = vadd.f32 %v1161, %v1167
  %v1170 = vadd.f32 %v1162, %v1167
  %v1171 = vadd.f32 %v1163, %v1167
  %1172 = vst.msk [vmem:[%s8] sm:$0xff] %vm1112, %v1168
  %1173 = vst.msk [vmem:[%s8 + $0x8] sm:$0xff] %vm1112, %v1169
  %1174 = vst.msk [vmem:[%s8 + $0x10] sm:$0xff] %vm1112, %v1170
  %1175 = vst.msk [vmem:[%s8 + $0x18] sm:$0xff] %vm1112, %v1171
  // Predicated region
  $region34: #{tpu_custom_call.1} parent=0 // pred_check
    _
  $region35: #{tpu_custom_call.1} parent=0 // pred_check_branch
    %1177 = sbr.rel (0) target = $region37
  $region36: #{tpu_custom_call.1} parent=0 // pred_region
    _
  $region37: #{tpu_custom_call.1} parent=0 // pred_fallthru
    _
  // Predicated region
  $region38: #{tpu_custom_call.1} parent=0 // pred_check
    _
  $region39: #{tpu_custom_call.1} parent=0 // pred_check_branch
    %1179 = sbr.rel (0) target = $region41
  $region40: #{tpu_custom_call.1} parent=0 // pred_region
    _
  $region41: #{tpu_custom_call.1} parent=0 // pred_fallthru
    _

</llo_original>
